<compile_context>
chip_gen: v7x
topology: tpu7x:2x2x1
jax: 0.10.0
libtpu: 0.0.40
codegen_flags: <defaults>
</compile_context>

<pallas_src>
import functools
import math

import numpy as np
import jax
import jax.numpy as jnp
from jax import lax
from jax.experimental import pallas as pl
from jax.experimental.pallas import tpu as pltpu

NUM_GROUPS = 32   # normalization() in improved DDPM == GroupNorm(32, C)
EPS = 1e-5        # PyTorch GroupNorm default eps


# --------------------------------------------------------------------------------------
# Kernel 1: GroupNorm + qkv projection, native (C, T) layout in, (H, T, d) q/k/v out.
# --------------------------------------------------------------------------------------
def groupnorm_qkv_kernel(x_ref, gamma_ref, beta_ref, gmat_ref, gmatt_ref,
                         wq_ref, bq_ref, wk_ref, bk_ref, wv_ref, bv_ref,
                         q_ref, k_ref, v_ref, *, num_groups, eps, compute_dtype):
    x = x_ref[0].astype(jnp.float32)                    # (C, T), channels on sublanes
    C, T = x.shape
    inv_n = 1.0 / float(T * (C // num_groups))

    # ---- GroupNorm(32, C): per-channel XLU lane-reduces + tiny constant group matmuls ----
    ch_sum = jnp.sum(x, axis=1, keepdims=True)          # (C, 1)
    ch_sq = jnp.sum(x * x, axis=1, keepdims=True)       # (C, 1)
    grp_sum = jnp.dot(gmatt_ref[...], ch_sum, preferred_element_type=jnp.float32)  # (G, 1)
    grp_sq = jnp.dot(gmatt_ref[...], ch_sq, preferred_element_type=jnp.float32)    # (G, 1)
    mean_g = grp_sum * inv_n
    var_g = jnp.maximum(grp_sq * inv_n - mean_g * mean_g, 0.0)   # clamp: no NaN from cancellation
    inv_g = lax.rsqrt(var_g + eps)
    mean_c = jnp.dot(gmat_ref[...], mean_g, preferred_element_type=jnp.float32)    # (C, 1)
    inv_c = jnp.dot(gmat_ref[...], inv_g, preferred_element_type=jnp.float32)      # (C, 1)

    # fold affine: xn = x * scale_c + shift_c   (2 VPU ops / element)
    scale_c = inv_c * gamma_ref[...]
    shift_c = beta_ref[...] - mean_c * scale_c
    xn = (x * scale_c + shift_c).astype(compute_dtype)  # (C, T)

    # ---- per-head q/k/v projections -> head-batched (H, T, d) layout ----
    dn = (((0,), (0,)), ((), ()))                        # contract over C (sublane axis)
    for h in range(wq_ref.shape[0]):                     # small static unroll over heads
        q_ref[0, h] = (lax.dot_general(xn, wq_ref[h], dn,
                                       preferred_element_type=jnp.float32)
                       + bq_ref[h]).astype(q_ref.dtype)
        k_ref[0, h] = (lax.dot_general(xn, wk_ref[h], dn,
                                       preferred_element_type=jnp.float32)
                       + bk_ref[h]).astype(k_ref.dtype)
        v_ref[0, h] = (lax.dot_general(xn, wv_ref[h], dn,
                                       preferred_element_type=jnp.float32)
                       + bv_ref[h]).astype(v_ref.dtype)


# --------------------------------------------------------------------------------------
# Kernel 2: flash attention (online softmax over kv tiles) + proj_out + residual.
# --------------------------------------------------------------------------------------
def flash_attn_kernel(x_ref, q_ref, k_ref, v_ref, wp_ref, bp_ref, o_ref,
                      m_sc, l_sc, acc_sc, *, compute_dtype):
    ki = pl.program_id(2)

    @pl.when(ki == 0)
    def _():
        m_sc[...] = jnp.full(m_sc.shape, -jnp.inf, jnp.float32)
        l_sc[...] = jnp.zeros(l_sc.shape, jnp.float32)
        acc_sc[...] = jnp.zeros(acc_sc.shape, jnp.float32)

    q = q_ref[0]                                          # (H, TQ, d)  (scale pre-folded)
    k = k_ref[0]                                          # (H, TK, d)
    v = v_ref[0]                                          # (H, TK, d)

    # head-batched QK^T: (H, TQ, TK) f32 — only a kv tile, never the full (T, T) matrix
    s = jnp.einsum('hqd,hkd->hqk', q, k, preferred_element_type=jnp.float32)

    m_prev = m_sc[...]
    m_new = jnp.maximum(m_prev, s.max(-1, keepdims=True))
    alpha = jnp.exp(m_prev - m_new)
    p = jnp.exp(s - m_new)
    l_sc[...] = alpha * l_sc[...] + p.sum(-1, keepdims=True)
    # deferred normalization: accumulate unnormalized p @ v, divide once at the end
    acc_sc[...] = alpha * acc_sc[...] + jnp.einsum(
        'hqk,hkd->hqd', p.astype(compute_dtype), v, preferred_element_type=jnp.float32)
    m_sc[...] = m_new

    @pl.when(ki == pl.num_programs(2) - 1)
    def _():
        a = acc_sc[...] * pl.reciprocal(l_sc[...], approx=True)   # (H, TQ, d), EUP recip
        a = a.astype(compute_dtype)
        # proj_out accumulated per head directly in native (C, TQ) layout (no concat,
        # no transpose), then residual + bias.
        dn = (((1,), (1,)), ((), ()))                    # contract over d
        out = lax.dot_general(wp_ref[0], a[0], dn, preferred_element_type=jnp.float32)
        for h in range(1, a.shape[0]):
            out = out + lax.dot_general(wp_ref[h], a[h], dn,
                                        preferred_element_type=jnp.float32)
        o_ref[0] = (x_ref[0].astype(jnp.float32) + out + bp_ref[...]).astype(o_ref.dtype)


# --------------------------------------------------------------------------------------
# Wrapper helpers
# --------------------------------------------------------------------------------------
def _group_matrices(channels, num_groups):
    cs = channels // num_groups
    gmat = (np.arange(channels)[:, None] // cs == np.arange(num_groups)[None, :])
    gmat = gmat.astype(np.float32)                       # (C, G)
    return jnp.asarray(gmat), jnp.asarray(gmat.T)        # (C, G), (G, C)


def _const_spec(shape):
    return pl.BlockSpec(shape, lambda *_: (0,) * len(shape))


def _pick_tile(T, target):
    """Largest multiple of 128 that divides T and is <= target, else full T."""
    if T <= target:
        return T
    t = (min(target, T) // 128) * 128
    while t >= 128:
        if T % t == 0:
            return t
        t -= 128
    return T


def _vmem_limit_bytes(block_entries, scratch_bytes=0, temp_bytes=0):
    """Estimate VMEM need from double-buffered blocks + scratch + compiler temps."""
    blocks = sum(2 * int(np.prod(s)) * jnp.dtype(dt).itemsize for s, dt in block_entries)
    need = blocks + scratch_bytes + temp_bytes + (6 << 20)
    # TODO(synk): cap toward <=48 MiB when targeting v7x's 64 MiB VMEM per TensorCore.
    return int(min(max(need, 32 << 20), 100 << 20))


# --------------------------------------------------------------------------------------
# Public wrapper
# --------------------------------------------------------------------------------------
def attention_block(x, params, num_heads, *, compute_dtype=jnp.bfloat16,
                    q_tile=512, kv_tile=512):
    """x: (B, C, *spatial) float32, params in PyTorch layout. Returns the same shape."""
    B, C, *spatial = x.shape
    T = int(np.prod(spatial))
    assert C % num_heads == 0 and C % NUM_GROUPS == 0
    d = C // num_heads
    H = num_heads

    x_ct = x.reshape(B, C, T)                            # native layout, no transpose

    # ---- weight prep: fold 1/sqrt(sqrt(d)) into q/k weights & biases (legacy qkv order) ----
    scale = 1.0 / math.sqrt(math.sqrt(d))
    w3 = params["w_qkv"].reshape(H, 3, d, C)             # row h*3d + part*d + j
    b3 = params["b_qkv"].reshape(H, 3, d)
    wq = (jnp.transpose(w3[:, 0], (0, 2, 1)) * scale).astype(compute_dtype)   # (H, C, d)
    wk = (jnp.transpose(w3[:, 1], (0, 2, 1)) * scale).astype(compute_dtype)
    wv = jnp.transpose(w3[:, 2], (0, 2, 1)).astype(compute_dtype)
    bq = (b3[:, 0] * scale)[:, None, :].astype(jnp.float32)                   # (H, 1, d)
    bk = (b3[:, 1] * scale)[:, None, :].astype(jnp.float32)
    bv = b3[:, 2][:, None, :].astype(jnp.float32)

    wp = jnp.transpose(params["w_proj"].reshape(C, H, d), (1, 0, 2)).astype(compute_dtype)  # (H, C, d)
    bp = params["b_proj"].astype(jnp.float32)[:, None]   # (C, 1)
    gamma = params["gamma"].astype(jnp.float32)[:, None]
    beta = params["beta"].astype(jnp.float32)[:, None]
    gmat, gmat_t = _group_matrices(C, NUM_GROUPS)

    # -------------------- pass 1: GroupNorm + qkv projection --------------------
    pre_vmem = _vmem_limit_bytes(
        [((1, C, T), x.dtype)] + [((1, H, T, d), compute_dtype)] * 3 +
        [((H, C, d), compute_dtype)] * 3,
        temp_bytes=4 * C * T)
    pre_kernel = functools.partial(groupnorm_qkv_kernel, num_groups=NUM_GROUPS,
                                   eps=EPS, compute_dtype=compute_dtype)
    qkv_shape = jax.ShapeDtypeStruct((B, H, T, d), compute_dtype)
    q_hbm, k_hbm, v_hbm = pl.pallas_call(
        pre_kernel,
        out_shape=(qkv_shape, qkv_shape, qkv_shape),
        grid=(B,),
        in_specs=[
            pl.BlockSpec((1, C, T), lambda b: (b, 0, 0)),          # x (native layout)
            _const_spec((C, 1)), _const_spec((C, 1)),              # gamma, beta
            _const_spec((C, NUM_GROUPS)), _const_spec((NUM_GROUPS, C)),  # gmat, gmat_t
            _const_spec((H, C, d)), _const_spec((H, 1, d)),        # wq, bq
            _const_spec((H, C, d)), _const_spec((H, 1, d)),        # wk, bk
            _const_spec((H, C, d)), _const_spec((H, 1, d)),        # wv, bv
        ],
        out_specs=(pl.BlockSpec((1, H, T, d), lambda b: (b, 0, 0, 0)),
                   pl.BlockSpec((1, H, T, d), lambda b: (b, 0, 0, 0)),
                   pl.BlockSpec((1, H, T, d), lambda b: (b, 0, 0, 0))),
        compiler_params=pltpu.CompilerParams(
            dimension_semantics=("parallel",), vmem_limit_bytes=pre_vmem),
    )(x_ct, gamma, beta, gmat, gmat_t, wq, bq, wk, bk, wv, bv)

    # -------------------- pass 2: flash attention + proj_out + residual --------------------
    TQ = _pick_tile(T, q_tile)
    TK = _pick_tile(T, kv_tile)
    nq, nk = T // TQ, T // TK
    fl_vmem = _vmem_limit_bytes(
        [((1, C, TQ), x.dtype), ((1, C, TQ), x.dtype),             # x in, out
         ((1, H, TQ, d), compute_dtype),
         ((1, H, TK, d), compute_dtype), ((1, H, TK, d), compute_dtype),
         ((H, C, d), compute_dtype), ((C, 1), jnp.float32)],
        scratch_bytes=4 * H * TQ * (d + 2),
        temp_bytes=2 * 4 * H * TQ * TK)                            # s and p tiles
    fl_kernel = functools.partial(flash_attn_kernel, compute_dtype=compute_dtype)

    out = pl.pallas_call(
        fl_kernel,
        out_shape=jax.ShapeDtypeStruct((B, C, T), x.dtype),
        grid=(B, nq, nk),
        in_specs=[
            pl.BlockSpec((1, C, TQ), lambda b, qi, ki: (b, 0, qi)),        # x (residual)
            pl.BlockSpec((1, H, TQ, d), lambda b, qi, ki: (b, 0, qi, 0)),  # q
            pl.BlockSpec((1, H, TK, d), lambda b, qi, ki: (b, 0, ki, 0)),  # k
            pl.BlockSpec((1, H, TK, d), lambda b, qi, ki: (b, 0, ki, 0)),  # v
            _const_spec((H, C, d)),                                        # w_proj (per head)
            _const_spec((C, 1)),                                           # b_proj
        ],
        out_specs=pl.BlockSpec((1, C, TQ), lambda b, qi, ki: (b, 0, qi)),
        scratch_shapes=[
            pltpu.VMEM((H, TQ, 1), jnp.float32),    # running max m
            pltpu.VMEM((H, TQ, 1), jnp.float32),    # running denom l
            pltpu.VMEM((H, TQ, d), jnp.float32),    # unnormalized output accumulator
        ],
        compiler_params=pltpu.CompilerParams(
            dimension_semantics=("parallel", "parallel", "arbitrary"),
            vmem_limit_bytes=fl_vmem),
    )(x_ct, q_hbm, k_hbm, v_hbm, wp, bp)

    return out.reshape(B, C, *spatial)


# --------------------------------------------------------------------------------------
# Pure-JAX reference mirroring the PyTorch AttentionBlock._forward
# --------------------------------------------------------------------------------------
def reference(x, params, num_heads):
    B, C, *spatial = x.shape
    T = int(np.prod(spatial))
    xf = x.reshape(B, C, T).astype(jnp.float32)

    G, cs = NUM_GROUPS, C // NUM_GROUPS
    xg = xf.reshape(B, G, cs, T)
    mean = jnp.mean(xg, axis=(2, 3), keepdims=True)
    var = jnp.mean((xg - mean) ** 2, axis=(2, 3), keepdims=True)
    xn = (xg - mean) / jnp.sqrt(var + EPS)
    xn = xn.reshape(B, C, T) * params["gamma"][None, :, None] + params["beta"][None, :, None]

    qkv = jnp.einsum("oc,bct->bot", params["w_qkv"], xn) + params["b_qkv"][None, :, None]
    ch = C // num_heads
    qkv = qkv.reshape(B * num_heads, 3 * ch, T)
    q, k, v = qkv[:, :ch], qkv[:, ch:2 * ch], qkv[:, 2 * ch:]
    scale = 1.0 / math.sqrt(math.sqrt(ch))
    w = jnp.einsum("bct,bcs->bts", q * scale, k * scale)
    w = jax.nn.softmax(w, axis=-1)
    a = jnp.einsum("bts,bcs->bct", w, v)
    h = a.reshape(B, C, T)
    h = jnp.einsum("oc,bct->bot", params["w_proj"], h) + params["b_proj"][None, :, None]
    return (xf + h).reshape(B, C, *spatial)


def init_params(key, channels):
    ks = jax.random.split(key, 6)
    bound = 1.0 / math.sqrt(channels)
    u = lambda k, shape: jax.random.uniform(k, shape, jnp.float32, -bound, bound)
    return {
        "gamma": 1.0 + 0.1 * jax.random.normal(ks[0], (channels,), jnp.float32),
        "beta": 0.1 * jax.random.normal(ks[1], (channels,), jnp.float32),
        # qkv conv1d weight (out=3C, in=C), bias (3C,) — PyTorch layout
        "w_qkv": u(ks[2], (3 * channels, channels)),
        "b_qkv": u(ks[3], (3 * channels,)),
        # proj_out is zero_module() in PyTorch; randomized so the test is non-trivial.
        "w_proj": u(ks[4], (channels, channels)),
        "b_proj": u(ks[5], (channels,)),
    }


if __name__ == "__main__":
    B, C, Hs, Ws, heads = 2, 64, 8, 8, 2          # C must be divisible by 32 (GroupNorm)
    key = jax.random.PRNGKey(0)
    kx, kp = jax.random.split(key)
    x = jax.random.normal(kx, (B, C, Hs, Ws), jnp.float32)
    params = init_params(kp, C)

    ref = reference(x, params, heads)

    # production path: bf16 MXU operands, f32 accumulation
    out_bf16 = jax.block_until_ready(attention_block(x, params, heads))
    assert out_bf16.shape == (B, C, Hs, Ws)
    err_bf16 = float(jnp.max(jnp.abs(out_bf16 - ref)))
    assert err_bf16 < 1.5e-1, f"bf16 path mismatch vs reference: {err_bf16}"

    # strict-parity path: f32 everywhere (matches the f32 PyTorch module)
    out_f32 = jax.block_until_ready(
        attention_block(x, params, heads, compute_dtype=jnp.float32))
    err_f32 = float(jnp.max(jnp.abs(out_f32 - ref)))
    assert err_f32 < 3e-3, f"f32 path mismatch vs reference: {err_f32}"

    print("KERNEL_OK")
</pallas_src>

<mosaic_0001>
module attributes {stable_mosaic.version = 11 : i64} {
  func.func @groupnorm_qkv_kernel(%arg0: i32, %arg1: memref<1x64x64xf32, #tpu.memory_space<vmem>>, %arg2: memref<64x1xf32, #tpu.memory_space<vmem>>, %arg3: memref<64x1xf32, #tpu.memory_space<vmem>>, %arg4: memref<64x32xf32, #tpu.memory_space<vmem>>, %arg5: memref<32x64xf32, #tpu.memory_space<vmem>>, %arg6: memref<2x64x32xbf16, #tpu.memory_space<vmem>>, %arg7: memref<2x1x32xf32, #tpu.memory_space<vmem>>, %arg8: memref<2x64x32xbf16, #tpu.memory_space<vmem>>, %arg9: memref<2x1x32xf32, #tpu.memory_space<vmem>>, %arg10: memref<2x64x32xbf16, #tpu.memory_space<vmem>>, %arg11: memref<2x1x32xf32, #tpu.memory_space<vmem>>, %arg12: memref<1x2x64x32xbf16, #tpu.memory_space<vmem>>, %arg13: memref<1x2x64x32xbf16, #tpu.memory_space<vmem>>, %arg14: memref<1x2x64x32xbf16, #tpu.memory_space<vmem>>) attributes {dimension_semantics = [#tpu.dimension_semantics<parallel>], iteration_bounds = array<i64: 2>, scalar_prefetch = 0 : i64, scratch_operands = 0 : i64, tpu.core_type = #tpu.core_type<tc>, window_params = [{transform_indices = @transform_0, window_bounds = array<i64: 1, 64, 64>}, {pipeline_mode = #tpu.pipeline_mode<synchronous>, transform_indices = @transform_1, window_bounds = array<i64: 64, 1>}, {pipeline_mode = #tpu.pipeline_mode<synchronous>, transform_indices = @transform_2, window_bounds = array<i64: 64, 1>}, {pipeline_mode = #tpu.pipeline_mode<synchronous>, transform_indices = @transform_3, window_bounds = array<i64: 64, 32>}, {pipeline_mode = #tpu.pipeline_mode<synchronous>, transform_indices = @transform_4, window_bounds = array<i64: 32, 64>}, {pipeline_mode = #tpu.pipeline_mode<synchronous>, transform_indices = @transform_5, window_bounds = array<i64: 2, 64, 32>}, {pipeline_mode = #tpu.pipeline_mode<synchronous>, transform_indices = @transform_6, window_bounds = array<i64: 2, 1, 32>}, {pipeline_mode = #tpu.pipeline_mode<synchronous>, transform_indices = @transform_7, window_bounds = array<i64: 2, 64, 32>}, {pipeline_mode = #tpu.pipeline_mode<synchronous>, transform_indices = @transform_8, window_bounds = array<i64: 2, 1, 32>}, {pipeline_mode = #tpu.pipeline_mode<synchronous>, transform_indices = @transform_9, window_bounds = array<i64: 2, 64, 32>}, {pipeline_mode = #tpu.pipeline_mode<synchronous>, transform_indices = @transform_10, window_bounds = array<i64: 2, 1, 32>}, {transform_indices = @transform_11, window_bounds = array<i64: 1, 2, 64, 32>}, {transform_indices = @transform_12, window_bounds = array<i64: 1, 2, 64, 32>}, {transform_indices = @transform_13, window_bounds = array<i64: 1, 2, 64, 32>}]} {
    %c0 = arith.constant 0 : index
    %c0_0 = arith.constant 0 : index
    %c0_1 = arith.constant 0 : index
    %0 = vector.load %arg1[%c0, %c0_0, %c0_1] : memref<1x64x64xf32, #tpu.memory_space<vmem>>, vector<1x64x64xf32>
    %1 = vector.shape_cast %0 : vector<1x64x64xf32> to vector<64x64xf32>
    %cst = arith.constant dense<0.000000e+00> : vector<64xf32>
    %2 = vector.multi_reduction <add>, %1, %cst [1] : vector<64x64xf32> to vector<64xf32>
    %3 = vector.shape_cast %2 : vector<64xf32> to vector<64x1xf32>
    %4 = arith.mulf %1, %1 : vector<64x64xf32>
    %cst_2 = arith.constant dense<0.000000e+00> : vector<64xf32>
    %5 = vector.multi_reduction <add>, %4, %cst_2 [1] : vector<64x64xf32> to vector<64xf32>
    %6 = vector.shape_cast %5 : vector<64xf32> to vector<64x1xf32>
    %c0_3 = arith.constant 0 : index
    %c0_4 = arith.constant 0 : index
    %7 = vector.load %arg5[%c0_3, %c0_4] : memref<32x64xf32, #tpu.memory_space<vmem>>, vector<32x64xf32>
    %cst_5 = arith.constant dense<0.000000e+00> : vector<32x1xf32>
    %8 = tpu.matmul %7, %3, %cst_5 {dimension_numbers = #tpu.dot_dimension_numbers<[1], [0], [0], [1], [0, 0, 1, 1], [], []>} : vector<32x64xf32>, vector<64x1xf32>, vector<32x1xf32> -> vector<32x1xf32>
    %c0_6 = arith.constant 0 : index
    %c0_7 = arith.constant 0 : index
    %9 = vector.load %arg5[%c0_6, %c0_7] : memref<32x64xf32, #tpu.memory_space<vmem>>, vector<32x64xf32>
    %cst_8 = arith.constant dense<0.000000e+00> : vector<32x1xf32>
    %10 = tpu.matmul %9, %6, %cst_8 {dimension_numbers = #tpu.dot_dimension_numbers<[1], [0], [0], [1], [0, 0, 1, 1], [], []>} : vector<32x64xf32>, vector<64x1xf32>, vector<32x1xf32> -> vector<32x1xf32>
    %cst_9 = arith.constant 7.812500e-03 : f32
    %11 = vector.broadcast %cst_9 : f32 to vector<32x1xf32>
    %12 = arith.mulf %8, %11 : vector<32x1xf32>
    %cst_10 = arith.constant 7.812500e-03 : f32
    %13 = vector.broadcast %cst_10 : f32 to vector<32x1xf32>
    %14 = arith.mulf %10, %13 : vector<32x1xf32>
    %15 = arith.mulf %12, %12 : vector<32x1xf32>
    %16 = arith.subf %14, %15 : vector<32x1xf32>
    %cst_11 = arith.constant 0.000000e+00 : f32
    %17 = vector.broadcast %cst_11 : f32 to vector<32x1xf32>
    %18 = arith.maximumf %16, %17 : vector<32x1xf32>
    %cst_12 = arith.constant 9.99999974E-6 : f32
    %19 = vector.broadcast %cst_12 : f32 to vector<32x1xf32>
    %20 = arith.addf %18, %19 : vector<32x1xf32>
    %21 = math.rsqrt %20 : vector<32x1xf32>
    %c0_13 = arith.constant 0 : index
    %c0_14 = arith.constant 0 : index
    %22 = vector.load %arg4[%c0_13, %c0_14] : memref<64x32xf32, #tpu.memory_space<vmem>>, vector<64x32xf32>
    %cst_15 = arith.constant dense<0.000000e+00> : vector<64x1xf32>
    %23 = tpu.matmul %22, %12, %cst_15 {dimension_numbers = #tpu.dot_dimension_numbers<[1], [0], [0], [1], [0, 0, 1, 1], [], []>} : vector<64x32xf32>, vector<32x1xf32>, vector<64x1xf32> -> vector<64x1xf32>
    %c0_16 = arith.constant 0 : index
    %c0_17 = arith.constant 0 : index
    %24 = vector.load %arg4[%c0_16, %c0_17] : memref<64x32xf32, #tpu.memory_space<vmem>>, vector<64x32xf32>
    %cst_18 = arith.constant dense<0.000000e+00> : vector<64x1xf32>
    %25 = tpu.matmul %24, %21, %cst_18 {dimension_numbers = #tpu.dot_dimension_numbers<[1], [0], [0], [1], [0, 0, 1, 1], [], []>} : vector<64x32xf32>, vector<32x1xf32>, vector<64x1xf32> -> vector<64x1xf32>
    %c0_19 = arith.constant 0 : index
    %c0_20 = arith.constant 0 : index
    %26 = vector.load %arg2[%c0_19, %c0_20] : memref<64x1xf32, #tpu.memory_space<vmem>>, vector<64x1xf32>
    %27 = arith.mulf %25, %26 : vector<64x1xf32>
    %c0_21 = arith.constant 0 : index
    %c0_22 = arith.constant 0 : index
    %28 = vector.load %arg3[%c0_21, %c0_22] : memref<64x1xf32, #tpu.memory_space<vmem>>, vector<64x1xf32>
    %29 = arith.mulf %23, %27 : vector<64x1xf32>
    %30 = arith.subf %28, %29 : vector<64x1xf32>
    %31 = vector.broadcast %27 : vector<64x1xf32> to vector<64x64xf32>
    %32 = arith.mulf %1, %31 : vector<64x64xf32>
    %33 = vector.broadcast %30 : vector<64x1xf32> to vector<64x64xf32>
    %34 = arith.addf %32, %33 : vector<64x64xf32>
    %35 = arith.truncf %34 : vector<64x64xf32> to vector<64x64xbf16>
    %c0_23 = arith.constant 0 : index
    %c0_24 = arith.constant 0 : index
    %c0_25 = arith.constant 0 : index
    %36 = vector.load %arg6[%c0_23, %c0_24, %c0_25] : memref<2x64x32xbf16, #tpu.memory_space<vmem>>, vector<1x64x32xbf16>
    %37 = vector.shape_cast %36 : vector<1x64x32xbf16> to vector<64x32xbf16>
    %cst_26 = arith.constant dense<0.000000e+00> : vector<64x32xf32>
    %38 = tpu.matmul %35, %37, %cst_26 {dimension_numbers = #tpu.dot_dimension_numbers<[0], [0], [1], [1], [0, 1, 1, 1], [], []>} : vector<64x64xbf16>, vector<64x32xbf16>, vector<64x32xf32> -> vector<64x32xf32>
    %c0_27 = arith.constant 0 : index
    %c0_28 = arith.constant 0 : index
    %c0_29 = arith.constant 0 : index
    %39 = vector.load %arg7[%c0_27, %c0_28, %c0_29] : memref<2x1x32xf32, #tpu.memory_space<vmem>>, vector<1x1x32xf32>
    %40 = vector.shape_cast %39 : vector<1x1x32xf32> to vector<1x32xf32>
    %41 = vector.broadcast %40 : vector<1x32xf32> to vector<64x32xf32>
    %42 = arith.addf %38, %41 : vector<64x32xf32>
    %43 = arith.truncf %42 : vector<64x32xf32> to vector<64x32xbf16>
    %c0_30 = arith.constant 0 : index
    %c0_31 = arith.constant 0 : index
    %c0_32 = arith.constant 0 : index
    %c0_33 = arith.constant 0 : index
    %44 = vector.load %arg12[%c0_30, %c0_31, %c0_32, %c0_33] : memref<1x2x64x32xbf16, #tpu.memory_space<vmem>>, vector<1x1x64x32xbf16>
    %45 = vector.shape_cast %44 : vector<1x1x64x32xbf16> to vector<64x32xbf16>
    %46 = vector.shape_cast %43 : vector<64x32xbf16> to vector<1x1x64x32xbf16>
    tpu.vector_store %arg12[%c0_30, %c0_31, %c0_32, %c0_33], %46 {strides = array<i32>} : memref<1x2x64x32xbf16, #tpu.memory_space<vmem>>, vector<1x1x64x32xbf16>,
    %c0_34 = arith.constant 0 : index
    %c0_35 = arith.constant 0 : index
    %c0_36 = arith.constant 0 : index
    %47 = vector.load %arg8[%c0_34, %c0_35, %c0_36] : memref<2x64x32xbf16, #tpu.memory_space<vmem>>, vector<1x64x32xbf16>
    %48 = vector.shape_cast %47 : vector<1x64x32xbf16> to vector<64x32xbf16>
    %cst_37 = arith.constant dense<0.000000e+00> : vector<64x32xf32>
    %49 = tpu.matmul %35, %48, %cst_37 {dimension_numbers = #tpu.dot_dimension_numbers<[0], [0], [1], [1], [0, 1, 1, 1], [], []>} : vector<64x64xbf16>, vector<64x32xbf16>, vector<64x32xf32> -> vector<64x32xf32>
    %c0_38 = arith.constant 0 : index
    %c0_39 = arith.constant 0 : index
    %c0_40 = arith.constant 0 : index
    %50 = vector.load %arg9[%c0_38, %c0_39, %c0_40] : memref<2x1x32xf32, #tpu.memory_space<vmem>>, vector<1x1x32xf32>
    %51 = vector.shape_cast %50 : vector<1x1x32xf32> to vector<1x32xf32>
    %52 = vector.broadcast %51 : vector<1x32xf32> to vector<64x32xf32>
    %53 = arith.addf %49, %52 : vector<64x32xf32>
    %54 = arith.truncf %53 : vector<64x32xf32> to vector<64x32xbf16>
    %c0_41 = arith.constant 0 : index
    %c0_42 = arith.constant 0 : index
    %c0_43 = arith.constant 0 : index
    %c0_44 = arith.constant 0 : index
    %55 = vector.load %arg13[%c0_41, %c0_42, %c0_43, %c0_44] : memref<1x2x64x32xbf16, #tpu.memory_space<vmem>>, vector<1x1x64x32xbf16>
    %56 = vector.shape_cast %55 : vector<1x1x64x32xbf16> to vector<64x32xbf16>
    %57 = vector.shape_cast %54 : vector<64x32xbf16> to vector<1x1x64x32xbf16>
    tpu.vector_store %arg13[%c0_41, %c0_42, %c0_43, %c0_44], %57 {strides = array<i32>} : memref<1x2x64x32xbf16, #tpu.memory_space<vmem>>, vector<1x1x64x32xbf16>,
    %c0_45 = arith.constant 0 : index
    %c0_46 = arith.constant 0 : index
    %c0_47 = arith.constant 0 : index
    %58 = vector.load %arg10[%c0_45, %c0_46, %c0_47] : memref<2x64x32xbf16, #tpu.memory_space<vmem>>, vector<1x64x32xbf16>
    %59 = vector.shape_cast %58 : vector<1x64x32xbf16> to vector<64x32xbf16>
    %cst_48 = arith.constant dense<0.000000e+00> : vector<64x32xf32>
    %60 = tpu.matmul %35, %59, %cst_48 {dimension_numbers = #tpu.dot_dimension_numbers<[0], [0], [1], [1], [0, 1, 1, 1], [], []>} : vector<64x64xbf16>, vector<64x32xbf16>, vector<64x32xf32> -> vector<64x32xf32>
    %c0_49 = arith.constant 0 : index
    %c0_50 = arith.constant 0 : index
    %c0_51 = arith.constant 0 : index
    %61 = vector.load %arg11[%c0_49, %c0_50, %c0_51] : memref<2x1x32xf32, #tpu.memory_space<vmem>>, vector<1x1x32xf32>
    %62 = vector.shape_cast %61 : vector<1x1x32xf32> to vector<1x32xf32>
    %63 = vector.broadcast %62 : vector<1x32xf32> to vector<64x32xf32>
    %64 = arith.addf %60, %63 : vector<64x32xf32>
    %65 = arith.truncf %64 : vector<64x32xf32> to vector<64x32xbf16>
    %c0_52 = arith.constant 0 : index
    %c0_53 = arith.constant 0 : index
    %c0_54 = arith.constant 0 : index
    %c0_55 = arith.constant 0 : index
    %66 = vector.load %arg14[%c0_52, %c0_53, %c0_54, %c0_55] : memref<1x2x64x32xbf16, #tpu.memory_space<vmem>>, vector<1x1x64x32xbf16>
    %67 = vector.shape_cast %66 : vector<1x1x64x32xbf16> to vector<64x32xbf16>
    %68 = vector.shape_cast %65 : vector<64x32xbf16> to vector<1x1x64x32xbf16>
    tpu.vector_store %arg14[%c0_52, %c0_53, %c0_54, %c0_55], %68 {strides = array<i32>} : memref<1x2x64x32xbf16, #tpu.memory_space<vmem>>, vector<1x1x64x32xbf16>,
    %c1 = arith.constant 1 : index
    %c0_56 = arith.constant 0 : index
    %c0_57 = arith.constant 0 : index
    %69 = vector.load %arg6[%c1, %c0_56, %c0_57] : memref<2x64x32xbf16, #tpu.memory_space<vmem>>, vector<1x64x32xbf16>
    %70 = vector.shape_cast %69 : vector<1x64x32xbf16> to vector<64x32xbf16>
    %cst_58 = arith.constant dense<0.000000e+00> : vector<64x32xf32>
    %71 = tpu.matmul %35, %70, %cst_58 {dimension_numbers = #tpu.dot_dimension_numbers<[0], [0], [1], [1], [0, 1, 1, 1], [], []>} : vector<64x64xbf16>, vector<64x32xbf16>, vector<64x32xf32> -> vector<64x32xf32>
    %c1_59 = arith.constant 1 : index
    %c0_60 = arith.constant 0 : index
    %c0_61 = arith.constant 0 : index
    %72 = vector.load %arg7[%c1_59, %c0_60, %c0_61] : memref<2x1x32xf32, #tpu.memory_space<vmem>>, vector<1x1x32xf32>
    %73 = vector.shape_cast %72 : vector<1x1x32xf32> to vector<1x32xf32>
    %74 = vector.broadcast %73 : vector<1x32xf32> to vector<64x32xf32>
    %75 = arith.addf %71, %74 : vector<64x32xf32>
    %76 = arith.truncf %75 : vector<64x32xf32> to vector<64x32xbf16>
    %c0_62 = arith.constant 0 : index
    %c1_63 = arith.constant 1 : index
    %c0_64 = arith.constant 0 : index
    %c0_65 = arith.constant 0 : index
    %77 = vector.load %arg12[%c0_62, %c1_63, %c0_64, %c0_65] : memref<1x2x64x32xbf16, #tpu.memory_space<vmem>>, vector<1x1x64x32xbf16>
    %78 = vector.shape_cast %77 : vector<1x1x64x32xbf16> to vector<64x32xbf16>
    %79 = vector.shape_cast %76 : vector<64x32xbf16> to vector<1x1x64x32xbf16>
    tpu.vector_store %arg12[%c0_62, %c1_63, %c0_64, %c0_65], %79 {strides = array<i32>} : memref<1x2x64x32xbf16, #tpu.memory_space<vmem>>, vector<1x1x64x32xbf16>,
    %c1_66 = arith.constant 1 : index
    %c0_67 = arith.constant 0 : index
    %c0_68 = arith.constant 0 : index
    %80 = vector.load %arg8[%c1_66, %c0_67, %c0_68] : memref<2x64x32xbf16, #tpu.memory_space<vmem>>, vector<1x64x32xbf16>
    %81 = vector.shape_cast %80 : vector<1x64x32xbf16> to vector<64x32xbf16>
    %cst_69 = arith.constant dense<0.000000e+00> : vector<64x32xf32>
    %82 = tpu.matmul %35, %81, %cst_69 {dimension_numbers = #tpu.dot_dimension_numbers<[0], [0], [1], [1], [0, 1, 1, 1], [], []>} : vector<64x64xbf16>, vector<64x32xbf16>, vector<64x32xf32> -> vector<64x32xf32>
    %c1_70 = arith.constant 1 : index
    %c0_71 = arith.constant 0 : index
    %c0_72 = arith.constant 0 : index
    %83 = vector.load %arg9[%c1_70, %c0_71, %c0_72] : memref<2x1x32xf32, #tpu.memory_space<vmem>>, vector<1x1x32xf32>
    %84 = vector.shape_cast %83 : vector<1x1x32xf32> to vector<1x32xf32>
    %85 = vector.broadcast %84 : vector<1x32xf32> to vector<64x32xf32>
    %86 = arith.addf %82, %85 : vector<64x32xf32>
    %87 = arith.truncf %86 : vector<64x32xf32> to vector<64x32xbf16>
    %c0_73 = arith.constant 0 : index
    %c1_74 = arith.constant 1 : index
    %c0_75 = arith.constant 0 : index
    %c0_76 = arith.constant 0 : index
    %88 = vector.load %arg13[%c0_73, %c1_74, %c0_75, %c0_76] : memref<1x2x64x32xbf16, #tpu.memory_space<vmem>>, vector<1x1x64x32xbf16>
    %89 = vector.shape_cast %88 : vector<1x1x64x32xbf16> to vector<64x32xbf16>
    %90 = vector.shape_cast %87 : vector<64x32xbf16> to vector<1x1x64x32xbf16>
    tpu.vector_store %arg13[%c0_73, %c1_74, %c0_75, %c0_76], %90 {strides = array<i32>} : memref<1x2x64x32xbf16, #tpu.memory_space<vmem>>, vector<1x1x64x32xbf16>,
    %c1_77 = arith.constant 1 : index
    %c0_78 = arith.constant 0 : index
    %c0_79 = arith.constant 0 : index
    %91 = vector.load %arg10[%c1_77, %c0_78, %c0_79] : memref<2x64x32xbf16, #tpu.memory_space<vmem>>, vector<1x64x32xbf16>
    %92 = vector.shape_cast %91 : vector<1x64x32xbf16> to vector<64x32xbf16>
    %cst_80 = arith.constant dense<0.000000e+00> : vector<64x32xf32>
    %93 = tpu.matmul %35, %92, %cst_80 {dimension_numbers = #tpu.dot_dimension_numbers<[0], [0], [1], [1], [0, 1, 1, 1], [], []>} : vector<64x64xbf16>, vector<64x32xbf16>, vector<64x32xf32> -> vector<64x32xf32>
    %c1_81 = arith.constant 1 : index
    %c0_82 = arith.constant 0 : index
    %c0_83 = arith.constant 0 : index
    %94 = vector.load %arg11[%c1_81, %c0_82, %c0_83] : memref<2x1x32xf32, #tpu.memory_space<vmem>>, vector<1x1x32xf32>
    %95 = vector.shape_cast %94 : vector<1x1x32xf32> to vector<1x32xf32>
    %96 = vector.broadcast %95 : vector<1x32xf32> to vector<64x32xf32>
    %97 = arith.addf %93, %96 : vector<64x32xf32>
    %98 = arith.truncf %97 : vector<64x32xf32> to vector<64x32xbf16>
    %c0_84 = arith.constant 0 : index
    %c1_85 = arith.constant 1 : index
    %c0_86 = arith.constant 0 : index
    %c0_87 = arith.constant 0 : index
    %99 = vector.load %arg14[%c0_84, %c1_85, %c0_86, %c0_87] : memref<1x2x64x32xbf16, #tpu.memory_space<vmem>>, vector<1x1x64x32xbf16>
    %100 = vector.shape_cast %99 : vector<1x1x64x32xbf16> to vector<64x32xbf16>
    %101 = vector.shape_cast %98 : vector<64x32xbf16> to vector<1x1x64x32xbf16>
    tpu.vector_store %arg14[%c0_84, %c1_85, %c0_86, %c0_87], %101 {strides = array<i32>} : memref<1x2x64x32xbf16, #tpu.memory_space<vmem>>, vector<1x1x64x32xbf16>,
    return
  }
  func.func @transform_0(%arg0: i32) -> (i32, i32, i32) {
    %c0_i32 = arith.constant 0 : i32
    %c0_i32_0 = arith.constant 0 : i32
    %c0_i32_1 = arith.constant 0 : i32
    return %arg0, %c0_i32, %c0_i32_0 : i32, i32, i32
  }
  func.func @transform_1(%arg0: i32) -> (i32, i32) {
    %c0_i32 = arith.constant 0 : i32
    %c0_i32_0 = arith.constant 0 : i32
    %c0_i32_1 = arith.constant 0 : i32
    return %c0_i32, %c0_i32_0 : i32, i32
  }
  func.func @transform_2(%arg0: i32) -> (i32, i32) {
    %c0_i32 = arith.constant 0 : i32
    %c0_i32_0 = arith.constant 0 : i32
    %c0_i32_1 = arith.constant 0 : i32
    return %c0_i32, %c0_i32_0 : i32, i32
  }
  func.func @transform_3(%arg0: i32) -> (i32, i32) {
    %c0_i32 = arith.constant 0 : i32
    %c0_i32_0 = arith.constant 0 : i32
    %c0_i32_1 = arith.constant 0 : i32
    return %c0_i32, %c0_i32_0 : i32, i32
  }
  func.func @transform_4(%arg0: i32) -> (i32, i32) {
    %c0_i32 = arith.constant 0 : i32
    %c0_i32_0 = arith.constant 0 : i32
    %c0_i32_1 = arith.constant 0 : i32
    return %c0_i32, %c0_i32_0 : i32, i32
  }
  func.func @transform_5(%arg0: i32) -> (i32, i32, i32) {
    %c0_i32 = arith.constant 0 : i32
    %c0_i32_0 = arith.constant 0 : i32
    %c0_i32_1 = arith.constant 0 : i32
    %c0_i32_2 = arith.constant 0 : i32
    return %c0_i32, %c0_i32_0, %c0_i32_1 : i32, i32, i32
  }
  func.func @transform_6(%arg0: i32) -> (i32, i32, i32) {
    %c0_i32 = arith.constant 0 : i32
    %c0_i32_0 = arith.constant 0 : i32
    %c0_i32_1 = arith.constant 0 : i32
    %c0_i32_2 = arith.constant 0 : i32
    return %c0_i32, %c0_i32_0, %c0_i32_1 : i32, i32, i32
  }
  func.func @transform_7(%arg0: i32) -> (i32, i32, i32) {
    %c0_i32 = arith.constant 0 : i32
    %c0_i32_0 = arith.constant 0 : i32
    %c0_i32_1 = arith.constant 0 : i32
    %c0_i32_2 = arith.constant 0 : i32
    return %c0_i32, %c0_i32_0, %c0_i32_1 : i32, i32, i32
  }
  func.func @transform_8(%arg0: i32) -> (i32, i32, i32) {
    %c0_i32 = arith.constant 0 : i32
    %c0_i32_0 = arith.constant 0 : i32
    %c0_i32_1 = arith.constant 0 : i32
    %c0_i32_2 = arith.constant 0 : i32
    return %c0_i32, %c0_i32_0, %c0_i32_1 : i32, i32, i32
  }
  func.func @transform_9(%arg0: i32) -> (i32, i32, i32) {
    %c0_i32 = arith.constant 0 : i32
    %c0_i32_0 = arith.constant 0 : i32
    %c0_i32_1 = arith.constant 0 : i32
    %c0_i32_2 = arith.constant 0 : i32
    return %c0_i32, %c0_i32_0, %c0_i32_1 : i32, i32, i32
  }
  func.func @transform_10(%arg0: i32) -> (i32, i32, i32) {
    %c0_i32 = arith.constant 0 : i32
    %c0_i32_0 = arith.constant 0 : i32
    %c0_i32_1 = arith.constant 0 : i32
    %c0_i32_2 = arith.constant 0 : i32
    return %c0_i32, %c0_i32_0, %c0_i32_1 : i32, i32, i32
  }
  func.func @transform_11(%arg0: i32) -> (i32, i32, i32, i32) {
    %c0_i32 = arith.constant 0 : i32
    %c0_i32_0 = arith.constant 0 : i32
    %c0_i32_1 = arith.constant 0 : i32
    %c0_i32_2 = arith.constant 0 : i32
    return %arg0, %c0_i32, %c0_i32_0, %c0_i32_1 : i32, i32, i32, i32
  }
  func.func @transform_12(%arg0: i32) -> (i32, i32, i32, i32) {
    %c0_i32 = arith.constant 0 : i32
    %c0_i32_0 = arith.constant 0 : i32
    %c0_i32_1 = arith.constant 0 : i32
    %c0_i32_2 = arith.constant 0 : i32
    return %arg0, %c0_i32, %c0_i32_0, %c0_i32_1 : i32, i32, i32, i32
  }
  func.func @transform_13(%arg0: i32) -> (i32, i32, i32, i32) {
    %c0_i32 = arith.constant 0 : i32
    %c0_i32_0 = arith.constant 0 : i32
    %c0_i32_1 = arith.constant 0 : i32
    %c0_i32_2 = arith.constant 0 : i32
    return %arg0, %c0_i32, %c0_i32_0, %c0_i32_1 : i32, i32, i32, i32
  }
}

</mosaic_0001>

<llo_original>
// kernel: tpu_custom_call.1
$region0: #{tpu_custom_call.1}
  #allocation0 [shape = 'u32[]', space=smem, size = 0x4, offset = 0x4, fixed_abs, tag = 'smem constant byte address 0x4 - core index']
  #allocation1 [shape = 'u32[144,128]{1,0:T(1,128)}', space=vmem, size = 0x12000, scoped, tag = 'internal scratch']
  %s0 = inlined_call_operand.vmem [shape: f32[2,64,64], index: 0, kind: input, shape index: {}]
  %s1 = inlined_call_operand.vmem [shape: f32[64,1], index: 1, kind: input, shape index: {}]
  %s2 = inlined_call_operand.vmem [shape: f32[64,1], index: 2, kind: input, shape index: {}]
  %s3 = inlined_call_operand.vmem [shape: f32[64,32], index: 3, kind: input, shape index: {}]
  %s4 = inlined_call_operand.vmem [shape: f32[32,64], index: 4, kind: input, shape index: {}]
  %s5 = inlined_call_operand.vmem [shape: bf16[2,64,32], index: 5, kind: input, shape index: {}]
  %s6 = inlined_call_operand.vmem [shape: f32[2,1,32], index: 6, kind: input, shape index: {}]
  %s7 = inlined_call_operand.vmem [shape: bf16[2,64,32], index: 7, kind: input, shape index: {}]
  %s8 = inlined_call_operand.vmem [shape: f32[2,1,32], index: 8, kind: input, shape index: {}]
  %s9 = inlined_call_operand.vmem [shape: bf16[2,64,32], index: 9, kind: input, shape index: {}]
  %s10 = inlined_call_operand.vmem [shape: f32[2,1,32], index: 10, kind: input, shape index: {}]
  %s11 = inlined_call_operand.vmem [shape: bf16[2,2,64,32], index: 11, kind: output, shape index: {0}]
  %s12 = inlined_call_operand.vmem [shape: bf16[2,2,64,32], index: 12, kind: output, shape index: {1}]
  %s13 = inlined_call_operand.vmem [shape: bf16[2,2,64,32], index: 13, kind: output, shape index: {2}]
  %14 = xla_tuple %s11, %s12, %s13
  %s15 = sld [smem:[#allocation0]]
  $region93: #{tpu_custom_call.1} parent=0
    _
  %s17 = ssub.s32 1, %s15
  %s18 = scalar_select 0, %s17, %s15
  loop: start=0, step=1, limit=4
  $region2: #{tpu_custom_call.1} parent=0 // loop_pre_header
    _
  $region3: #{tpu_custom_call.1} parent=0 // loop_header
    %s20 = sphi 0, %s24
    %p21 = scmp.ge.s32.totalorder %s20, 4
    %s30 = sphi 0, %s32
    %s33 = sphi 0, %s30
    %s34 = sphi 0, %s33
    %s50 = sphi 0, %s34
    %s54 = sphi 0, %s54
    %s56 = sphi 0, %s54
    %s57 = sphi 0, %s56
    %s71 = sphi 0, %s57
    %s75 = sphi 0, %s75
    %s77 = sphi 0, %s75
    %s78 = sphi 0, %s77
    %s92 = sphi 0, %s78
    %s96 = sphi 0, %s96
    %s98 = sphi 0, %s96
    %s99 = sphi 0, %s98
    %s113 = sphi 0, %s99
    %s117 = sphi 0, %s117
    %s119 = sphi 0, %s117
    %s120 = sphi 0, %s119
    %s134 = sphi 0, %s120
    %s138 = sphi 0, %s138
    %s140 = sphi 0, %s138
    %s141 = sphi 0, %s140
    %s155 = sphi 0, %s141
    %s159 = sphi 0, %s159
    %s161 = sphi 0, %s159
    %s162 = sphi 0, %s161
    %s176 = sphi 0, %s162
    %s180 = sphi 0, %s180
    %s182 = sphi 0, %s180
    %s183 = sphi 0, %s182
    %s197 = sphi 0, %s183
    %s201 = sphi 0, %s201
    %s203 = sphi 0, %s201
    %s204 = sphi 0, %s203
    %s218 = sphi 0, %s204
    %s222 = sphi 0, %s222
    %s224 = sphi 0, %s222
    %s225 = sphi 0, %s224
    %s239 = sphi 0, %s225
    %s243 = sphi 0, %s243
    %s245 = sphi 0, %s243
    %s246 = sphi 0, %s245
    %s260 = sphi 0, %s246
    %s266 = sphi 0, %s268
    %s269 = sphi 0, %s266
    %s270 = sphi 0, %s269
    %s286 = sphi 0, %s270
    %s292 = sphi 0, %s294
    %s295 = sphi 0, %s292
    %s296 = sphi 0, %s295
    %s312 = sphi 0, %s296
    %s318 = sphi 0, %s320
    %s321 = sphi 0, %s318
    %s322 = sphi 0, %s321
    %s338 = sphi 0, %s322
  $region4: #{tpu_custom_call.1} parent=0 // loop_header_branch
    %23 = sbr.rel (%p21) target = $region8
  $region5: #{tpu_custom_call.1} parent=0 // loop_body
    %s25 = ssub.s32 %s20, 1
    %s26 = ssub.s32 %s20, 2
    %s27 = sadd.s32 %s20, 1
    %s28 = ssub.s32 %s20, %s27
    %p29 = scmp.eq.s32.totalorder %s28, 0
    %s31 = sadd.s32 %s30, 1
    %s32 = scalar_select %p29, %s30, %s31
    %p35 = pneg %p29
    %p36 = scmp.eq.s32.totalorder %s20, 1
    %p37 = por %p35, %p36
    %p38 = scmp.ne.s32.totalorder %s30, %s33
    %p39 = scmp.eq.s32.totalorder %s20, 0
    %p40 = por %p38, %p39
    %p41 = scmp.ne.s32.totalorder %s30, %s33
    %p42 = scmp.eq.s32.totalorder %s25, 1
    %p43 = por %p41, %p42
    %p44 = scmp.ne.s32.totalorder %s33, %s34
    %p45 = scmp.eq.s32.totalorder %s25, 0
    %p46 = por %p44, %p45
    %p47 = scmp.ne.s32.totalorder %s33, %s34
    %p48 = scmp.eq.s32.totalorder %s26, 1
    %p49 = por %p47, %p48
    %p51 = scmp.ne.s32.totalorder %s34, %s50
    %p52 = scmp.eq.s32.totalorder %s26, 0
    %p53 = por %p51, %p52
    %s55 = sadd.s32 %s54, 1
    %p58 = scmp.eq.s32.totalorder %s20, 1
    %p59 = scmp.ne.s32.totalorder %s54, %s56
    %p60 = scmp.eq.s32.totalorder %s20, 0
    %p61 = por %p59, %p60
    %p62 = scmp.ne.s32.totalorder %s54, %s56
    %p63 = scmp.eq.s32.totalorder %s25, 1
    %p64 = por %p62, %p63
    %p65 = scmp.ne.s32.totalorder %s56, %s57
    %p66 = scmp.eq.s32.totalorder %s25, 0
    %p67 = por %p65, %p66
    %p68 = scmp.ne.s32.totalorder %s56, %s57
    %p69 = scmp.eq.s32.totalorder %s26, 1
    %p70 = por %p68, %p69
    %p72 = scmp.ne.s32.totalorder %s57, %s71
    %p73 = scmp.eq.s32.totalorder %s26, 0
    %p74 = por %p72, %p73
    %s76 = sadd.s32 %s75, 1
    %p79 = scmp.eq.s32.totalorder %s20, 1
    %p80 = scmp.ne.s32.totalorder %s75, %s77
    %p81 = scmp.eq.s32.totalorder %s20, 0
    %p82 = por %p80, %p81
    %p83 = scmp.ne.s32.totalorder %s75, %s77
    %p84 = scmp.eq.s32.totalorder %s25, 1
    %p85 = por %p83, %p84
    %p86 = scmp.ne.s32.totalorder %s77, %s78
    %p87 = scmp.eq.s32.totalorder %s25, 0
    %p88 = por %p86, %p87
    %p89 = scmp.ne.s32.totalorder %s77, %s78
    %p90 = scmp.eq.s32.totalorder %s26, 1
    %p91 = por %p89, %p90
    %p93 = scmp.ne.s32.totalorder %s78, %s92
    %p94 = scmp.eq.s32.totalorder %s26, 0
    %p95 = por %p93, %p94
    %s97 = sadd.s32 %s96, 1
    %p100 = scmp.eq.s32.totalorder %s20, 1
    %p101 = scmp.ne.s32.totalorder %s96, %s98
    %p102 = scmp.eq.s32.totalorder %s20, 0
    %p103 = por %p101, %p102
    %p104 = scmp.ne.s32.totalorder %s96, %s98
    %p105 = scmp.eq.s32.totalorder %s25, 1
    %p106 = por %p104, %p105
    %p107 = scmp.ne.s32.totalorder %s98, %s99
    %p108 = scmp.eq.s32.totalorder %s25, 0
    %p109 = por %p107, %p108
    %p110 = scmp.ne.s32.totalorder %s98, %s99
    %p111 = scmp.eq.s32.totalorder %s26, 1
    %p112 = por %p110, %p111
    %p114 = scmp.ne.s32.totalorder %s99, %s113
    %p115 = scmp.eq.s32.totalorder %s26, 0
    %p116 = por %p114, %p115
    %s118 = sadd.s32 %s117, 1
    %p121 = scmp.eq.s32.totalorder %s20, 1
    %p122 = scmp.ne.s32.totalorder %s117, %s119
    %p123 = scmp.eq.s32.totalorder %s20, 0
    %p124 = por %p122, %p123
    %p125 = scmp.ne.s32.totalorder %s117, %s119
    %p126 = scmp.eq.s32.totalorder %s25, 1
    %p127 = por %p125, %p126
    %p128 = scmp.ne.s32.totalorder %s119, %s120
    %p129 = scmp.eq.s32.totalorder %s25, 0
    %p130 = por %p128, %p129
    %p131 = scmp.ne.s32.totalorder %s119, %s120
    %p132 = scmp.eq.s32.totalorder %s26, 1
    %p133 = por %p131, %p132
    %p135 = scmp.ne.s32.totalorder %s120, %s134
    %p136 = scmp.eq.s32.totalorder %s26, 0
    %p137 = por %p135, %p136
    %s139 = sadd.s32 %s138, 1
    %p142 = scmp.eq.s32.totalorder %s20, 1
    %p143 = scmp.ne.s32.totalorder %s138, %s140
    %p144 = scmp.eq.s32.totalorder %s20, 0
    %p145 = por %p143, %p144
    %p146 = scmp.ne.s32.totalorder %s138, %s140
    %p147 = scmp.eq.s32.totalorder %s25, 1
    %p148 = por %p146, %p147
    %p149 = scmp.ne.s32.totalorder %s140, %s141
    %p150 = scmp.eq.s32.totalorder %s25, 0
    %p151 = por %p149, %p150
    %p152 = scmp.ne.s32.totalorder %s140, %s141
    %p153 = scmp.eq.s32.totalorder %s26, 1
    %p154 = por %p152, %p153
    %p156 = scmp.ne.s32.totalorder %s141, %s155
    %p157 = scmp.eq.s32.totalorder %s26, 0
    %p158 = por %p156, %p157
    %s160 = sadd.s32 %s159, 1
    %p163 = scmp.eq.s32.totalorder %s20, 1
    %p164 = scmp.ne.s32.totalorder %s159, %s161
    %p165 = scmp.eq.s32.totalorder %s20, 0
    %p166 = por %p164, %p165
    %p167 = scmp.ne.s32.totalorder %s159, %s161
    %p168 = scmp.eq.s32.totalorder %s25, 1
    %p169 = por %p167, %p168
    %p170 = scmp.ne.s32.totalorder %s161, %s162
    %p171 = scmp.eq.s32.totalorder %s25, 0
    %p172 = por %p170, %p171
    %p173 = scmp.ne.s32.totalorder %s161, %s162
    %p174 = scmp.eq.s32.totalorder %s26, 1
    %p175 = por %p173, %p174
    %p177 = scmp.ne.s32.totalorder %s162, %s176
    %p178 = scmp.eq.s32.totalorder %s26, 0
    %p179 = por %p177, %p178
    %s181 = sadd.s32 %s180, 1
    %p184 = scmp.eq.s32.totalorder %s20, 1
    %p185 = scmp.ne.s32.totalorder %s180, %s182
    %p186 = scmp.eq.s32.totalorder %s20, 0
    %p187 = por %p185, %p186
    %p188 = scmp.ne.s32.totalorder %s180, %s182
    %p189 = scmp.eq.s32.totalorder %s25, 1
    %p190 = por %p188, %p189
    %p191 = scmp.ne.s32.totalorder %s182, %s183
    %p192 = scmp.eq.s32.totalorder %s25, 0
    %p193 = por %p191, %p192
    %p194 = scmp.ne.s32.totalorder %s182, %s183
    %p195 = scmp.eq.s32.totalorder %s26, 1
    %p196 = por %p194, %p195
    %p198 = scmp.ne.s32.totalorder %s183, %s197
    %p199 = scmp.eq.s32.totalorder %s26, 0
    %p200 = por %p198, %p199
    %s202 = sadd.s32 %s201, 1
    %p205 = scmp.eq.s32.totalorder %s20, 1
    %p206 = scmp.ne.s32.totalorder %s201, %s203
    %p207 = scmp.eq.s32.totalorder %s20, 0
    %p208 = por %p206, %p207
    %p209 = scmp.ne.s32.totalorder %s201, %s203
    %p210 = scmp.eq.s32.totalorder %s25, 1
    %p211 = por %p209, %p210
    %p212 = scmp.ne.s32.totalorder %s203, %s204
    %p213 = scmp.eq.s32.totalorder %s25, 0
    %p214 = por %p212, %p213
    %p215 = scmp.ne.s32.totalorder %s203, %s204
    %p216 = scmp.eq.s32.totalorder %s26, 1
    %p217 = por %p215, %p216
    %p219 = scmp.ne.s32.totalorder %s204, %s218
    %p220 = scmp.eq.s32.totalorder %s26, 0
    %p221 = por %p219, %p220
    %s223 = sadd.s32 %s222, 1
    %p226 = scmp.eq.s32.totalorder %s20, 1
    %p227 = scmp.ne.s32.totalorder %s222, %s224
    %p228 = scmp.eq.s32.totalorder %s20, 0
    %p229 = por %p227, %p228
    %p230 = scmp.ne.s32.totalorder %s222, %s224
    %p231 = scmp.eq.s32.totalorder %s25, 1
    %p232 = por %p230, %p231
    %p233 = scmp.ne.s32.totalorder %s224, %s225
    %p234 = scmp.eq.s32.totalorder %s25, 0
    %p235 = por %p233, %p234
    %p236 = scmp.ne.s32.totalorder %s224, %s225
    %p237 = scmp.eq.s32.totalorder %s26, 1
    %p238 = por %p236, %p237
    %p240 = scmp.ne.s32.totalorder %s225, %s239
    %p241 = scmp.eq.s32.totalorder %s26, 0
    %p242 = por %p240, %p241
    %s244 = sadd.s32 %s243, 1
    %p247 = scmp.eq.s32.totalorder %s20, 1
    %p248 = scmp.ne.s32.totalorder %s243, %s245
    %p249 = scmp.eq.s32.totalorder %s20, 0
    %p250 = por %p248, %p249
    %p251 = scmp.ne.s32.totalorder %s243, %s245
    %p252 = scmp.eq.s32.totalorder %s25, 1
    %p253 = por %p251, %p252
    %p254 = scmp.ne.s32.totalorder %s245, %s246
    %p255 = scmp.eq.s32.totalorder %s25, 0
    %p256 = por %p254, %p255
    %p257 = scmp.ne.s32.totalorder %s245, %s246
    %p258 = scmp.eq.s32.totalorder %s26, 1
    %p259 = por %p257, %p258
    %p261 = scmp.ne.s32.totalorder %s246, %s260
    %p262 = scmp.eq.s32.totalorder %s26, 0
    %p263 = por %p261, %p262
    %s264 = ssub.s32 %s20, %s27
    %p265 = scmp.eq.s32.totalorder %s264, 0
    %s267 = sadd.s32 %s266, 1
    %s268 = scalar_select %p265, %s266, %s267
    %p271 = pneg %p265
    %p272 = scmp.eq.s32.totalorder %s20, 1
    %p273 = por %p271, %p272
    %p274 = scmp.ne.s32.totalorder %s266, %s269
    %p275 = scmp.eq.s32.totalorder %s20, 0
    %p276 = por %p274, %p275
    %p277 = scmp.ne.s32.totalorder %s266, %s269
    %p278 = scmp.eq.s32.totalorder %s25, 1
    %p279 = por %p277, %p278
    %p280 = scmp.ne.s32.totalorder %s269, %s270
    %p281 = scmp.eq.s32.totalorder %s25, 0
    %p282 = por %p280, %p281
    %p283 = scmp.ne.s32.totalorder %s269, %s270
    %p284 = scmp.eq.s32.totalorder %s26, 1
    %p285 = por %p283, %p284
    %p287 = scmp.ne.s32.totalorder %s270, %s286
    %p288 = scmp.eq.s32.totalorder %s26, 0
    %p289 = por %p287, %p288
    %s290 = ssub.s32 %s20, %s27
    %p291 = scmp.eq.s32.totalorder %s290, 0
    %s293 = sadd.s32 %s292, 1
    %s294 = scalar_select %p291, %s292, %s293
    %p297 = pneg %p291
    %p298 = scmp.eq.s32.totalorder %s20, 1
    %p299 = por %p297, %p298
    %p300 = scmp.ne.s32.totalorder %s292, %s295
    %p301 = scmp.eq.s32.totalorder %s20, 0
    %p302 = por %p300, %p301
    %p303 = scmp.ne.s32.totalorder %s292, %s295
    %p304 = scmp.eq.s32.totalorder %s25, 1
    %p305 = por %p303, %p304
    %p306 = scmp.ne.s32.totalorder %s295, %s296
    %p307 = scmp.eq.s32.totalorder %s25, 0
    %p308 = por %p306, %p307
    %p309 = scmp.ne.s32.totalorder %s295, %s296
    %p310 = scmp.eq.s32.totalorder %s26, 1
    %p311 = por %p309, %p310
    %p313 = scmp.ne.s32.totalorder %s296, %s312
    %p314 = scmp.eq.s32.totalorder %s26, 0
    %p315 = por %p313, %p314
    %s316 = ssub.s32 %s20, %s27
    %p317 = scmp.eq.s32.totalorder %s316, 0
    %s319 = sadd.s32 %s318, 1
    %s320 = scalar_select %p317, %s318, %s319
    %p323 = pneg %p317
    %p324 = scmp.eq.s32.totalorder %s20, 1
    %p325 = por %p323, %p324
    %p326 = scmp.ne.s32.totalorder %s318, %s321
    %p327 = scmp.eq.s32.totalorder %s20, 0
    %p328 = por %p326, %p327
    %p329 = scmp.ne.s32.totalorder %s318, %s321
    %p330 = scmp.eq.s32.totalorder %s25, 1
    %p331 = por %p329, %p330
    %p332 = scmp.ne.s32.totalorder %s321, %s322
    %p333 = scmp.eq.s32.totalorder %s25, 0
    %p334 = por %p332, %p333
    %p335 = scmp.ne.s32.totalorder %s321, %s322
    %p336 = scmp.eq.s32.totalorder %s26, 1
    %p337 = por %p335, %p336
    %p339 = scmp.ne.s32.totalorder %s322, %s338
    %p340 = scmp.eq.s32.totalorder %s26, 0
    %p341 = por %p339, %p340
    %p342 = scmp.le.s32.totalorder 1, %s20
    %p343 = scmp.lt.s32.totalorder %s20, 3
    %p344 = pnand %p342, %p343
    %p345 = pneg %p344
    // Predicated region
    $region9: #{tpu_custom_call.1} parent=5 // pred_check
      _
    $region10: #{tpu_custom_call.1} parent=5 // pred_check_branch
      %347 = sbr.rel (%p344) target = $region12
    $region11: #{tpu_custom_call.1} parent=5 // pred_region
      %s348 = ssub.s32 %s20, 1
      // Predicated region
      $region13: #{tpu_custom_call.1} parent=11 // pred_check
        %p349 = pneg %p67
      $region14: #{tpu_custom_call.1} parent=11 // pred_check_branch
        %351 = sbr.rel (%p349) target = $region16
      $region15: #{tpu_custom_call.1} parent=11 // pred_region
        _
      $region16: #{tpu_custom_call.1} parent=11 // pred_fallthru
        _
      // Predicated region
      $region17: #{tpu_custom_call.1} parent=11 // pred_check
        %p352 = pneg %p88
      $region18: #{tpu_custom_call.1} parent=11 // pred_check_branch
        %354 = sbr.rel (%p352) target = $region20
      $region19: #{tpu_custom_call.1} parent=11 // pred_region
        _
      $region20: #{tpu_custom_call.1} parent=11 // pred_fallthru
        _
      // Predicated region
      $region21: #{tpu_custom_call.1} parent=11 // pred_check
        %p355 = pneg %p109
      $region22: #{tpu_custom_call.1} parent=11 // pred_check_branch
        %357 = sbr.rel (%p355) target = $region24
      $region23: #{tpu_custom_call.1} parent=11 // pred_region
        _
      $region24: #{tpu_custom_call.1} parent=11 // pred_fallthru
        _
      // Predicated region
      $region25: #{tpu_custom_call.1} parent=11 // pred_check
        %p358 = pneg %p130
      $region26: #{tpu_custom_call.1} parent=11 // pred_check_branch
        %360 = sbr.rel (%p358) target = $region28
      $region27: #{tpu_custom_call.1} parent=11 // pred_region
        _
      $region28: #{tpu_custom_call.1} parent=11 // pred_fallthru
        _
      // Predicated region
      $region29: #{tpu_custom_call.1} parent=11 // pred_check
        %p361 = pneg %p151
      $region30: #{tpu_custom_call.1} parent=11 // pred_check_branch
        %363 = sbr.rel (%p361) target = $region32
      $region31: #{tpu_custom_call.1} parent=11 // pred_region
        _
      $region32: #{tpu_custom_call.1} parent=11 // pred_fallthru
        _
      // Predicated region
      $region33: #{tpu_custom_call.1} parent=11 // pred_check
        %p364 = pneg %p172
      $region34: #{tpu_custom_call.1} parent=11 // pred_check_branch
        %366 = sbr.rel (%p364) target = $region36
      $region35: #{tpu_custom_call.1} parent=11 // pred_region
        _
      $region36: #{tpu_custom_call.1} parent=11 // pred_fallthru
        _
      // Predicated region
      $region37: #{tpu_custom_call.1} parent=11 // pred_check
        %p367 = pneg %p193
      $region38: #{tpu_custom_call.1} parent=11 // pred_check_branch
        %369 = sbr.rel (%p367) target = $region40
      $region39: #{tpu_custom_call.1} parent=11 // pred_region
        _
      $region40: #{tpu_custom_call.1} parent=11 // pred_fallthru
        _
      // Predicated region
      $region41: #{tpu_custom_call.1} parent=11 // pred_check
        %p370 = pneg %p214
      $region42: #{tpu_custom_call.1} parent=11 // pred_check_branch
        %372 = sbr.rel (%p370) target = $region44
      $region43: #{tpu_custom_call.1} parent=11 // pred_region
        _
      $region44: #{tpu_custom_call.1} parent=11 // pred_fallthru
        _
      // Predicated region
      $region45: #{tpu_custom_call.1} parent=11 // pred_check
        %p373 = pneg %p235
      $region46: #{tpu_custom_call.1} parent=11 // pred_check_branch
        %375 = sbr.rel (%p373) target = $region48
      $region47: #{tpu_custom_call.1} parent=11 // pred_region
        _
      $region48: #{tpu_custom_call.1} parent=11 // pred_fallthru
        _
      // Predicated region
      $region49: #{tpu_custom_call.1} parent=11 // pred_check
        %p376 = pneg %p256
      $region50: #{tpu_custom_call.1} parent=11 // pred_check_branch
        %378 = sbr.rel (%p376) target = $region52
      $region51: #{tpu_custom_call.1} parent=11 // pred_region
        _
      $region52: #{tpu_custom_call.1} parent=11 // pred_fallthru
        _
    $region12: #{tpu_custom_call.1} parent=5 // pred_fallthru
      _
    %p379 = scmp.lt.s32.totalorder %s20, 2
    // Predicated region
    $region53: #{tpu_custom_call.1} parent=5 // pred_check
      %p380 = pneg %p379
    $region54: #{tpu_custom_call.1} parent=5 // pred_check_branch
      %382 = sbr.rel (%p380) target = $region56
    $region55: #{tpu_custom_call.1} parent=5 // pred_region
      // Predicated region
      $region57: #{tpu_custom_call.1} parent=55 // pred_check
        %p383 = pneg %p40
      $region58: #{tpu_custom_call.1} parent=55 // pred_check_branch
        %385 = sbr.rel (%p383) target = $region60
      $region59: #{tpu_custom_call.1} parent=55 // pred_region
        %p386 = scmp.lt.s32.totalorder %s20, 1
        %s387 = scalar_select %p386, %s20, 1
        %s388 = smul.addr %s387, 8
        %s389 = smul.addr %s388, 8
        %s390 = scalar_lea.vmem %s0, %s389
      $region60: #{tpu_custom_call.1} parent=55 // pred_fallthru
        _
    $region56: #{tpu_custom_call.1} parent=5 // pred_fallthru
      _
    %p391 = scmp.le.s32.totalorder 1, %s20
    %p392 = scmp.lt.s32.totalorder %s20, 3
    %p393 = pnand %p391, %p392
    %p394 = pneg %p393
    // Predicated region
    $region61: #{tpu_custom_call.1} parent=5 // pred_check
      _
    $region62: #{tpu_custom_call.1} parent=5 // pred_check_branch
      %396 = sbr.rel (%p393) target = $region64
    $region63: #{tpu_custom_call.1} parent=5 // pred_region
      %s397 = ssub.s32 %s20, 1
      %p398 = scmp.lt.s32.totalorder %s25, 1
      %s399 = scalar_select %p398, %s25, 1
      %s400 = smul.addr %s399, 8
      %s401 = smul.addr %s400, 8
      %s402 = scalar_lea.vmem %s0, %s401
      %p403 = pneg %p46
      %p404 = pneg %p43
      %p405 = pneg %p67
      %p406 = pneg %p64
      %p407 = pneg %p88
      %p408 = pneg %p85
      %p409 = pneg %p109
      %p410 = pneg %p106
      %p411 = pneg %p130
      %p412 = pneg %p127
      %p413 = pneg %p151
      %p414 = pneg %p148
      %p415 = pneg %p172
      %p416 = pneg %p169
      %p417 = pneg %p193
      %p418 = pneg %p190
      %p419 = pneg %p214
      %p420 = pneg %p211
      %p421 = pneg %p235
      %p422 = pneg %p232
      %p423 = pneg %p256
      %p424 = pneg %p253
      %p425 = pneg %p282
      %p426 = pneg %p279
      %p427 = scmp.lt.s32.totalorder %s25, 1
      %s428 = scalar_select %p427, %s25, 1
      %s429 = smul.addr %s428, 16
      %s430 = smul.addr %s429, 4
      %s431 = scalar_lea.vmem %s11, %s430
      %p432 = pneg %p308
      %p433 = pneg %p305
      %p434 = scmp.lt.s32.totalorder %s25, 1
      %s435 = scalar_select %p434, %s25, 1
      %s436 = smul.addr %s435, 16
      %s437 = smul.addr %s436, 4
      %s438 = scalar_lea.vmem %s12, %s437
      %p439 = pneg %p334
      %p440 = pneg %p331
      %p441 = scmp.lt.s32.totalorder %s25, 1
      %s442 = scalar_select %p441, %s25, 1
      %s443 = smul.addr %s442, 16
      %s444 = smul.addr %s443, 4
      %s445 = scalar_lea.vmem %s13, %s444
      %p446 = scmp.lt.s32.totalorder %s25, 1
      %s447 = scalar_select %p446, %s25, 1
      %s448 = smul.addr %s447, 8
      %s449 = smul.addr %s448, 8
      %s450 = scalar_lea.vmem %s0, %s449
      %p451 = scmp.lt.s32.totalorder %s25, 1
      %s452 = scalar_select %p451, %s25, 1
      %s453 = smul.addr %s452, 16
      %s454 = smul.addr %s453, 4
      %s455 = scalar_lea.vmem %s11, %s454
      %p456 = scmp.lt.s32.totalorder %s25, 1
      %s457 = scalar_select %p456, %s25, 1
      %s458 = smul.addr %s457, 16
      %s459 = smul.addr %s458, 4
      %s460 = scalar_lea.vmem %s12, %s459
      %p461 = scmp.lt.s32.totalorder %s25, 1
      %s462 = scalar_select %p461, %s25, 1
      %s463 = smul.addr %s462, 16
      %s464 = smul.addr %s463, 4
      %s465 = scalar_lea.vmem %s13, %s464
      %v467 = vld [vmem:[%s450] sm:$0xff]
      %v468 = vld [vmem:[%s450 + $0x8] sm:$0xff]
      %v469 = vld [vmem:[%s450 + $0x10] sm:$0xff]
      %v470 = vld [vmem:[%s450 + $0x18] sm:$0xff]
      %v471 = vld [vmem:[%s450 + $0x20] sm:$0xff]
      %v472 = vld [vmem:[%s450 + $0x28] sm:$0xff]
      %v473 = vld [vmem:[%s450 + $0x30] sm:$0xff]
      %v474 = vld [vmem:[%s450 + $0x38] sm:$0xff]
      %vm475 = vcmask 523264
      %v476 = vsel %vm475, %v467, 0.0
      %477 = vadd.xlane.f32.xlu0 %v476
      %v478 = vpop.xlane.xlu0 %477
      %v479 = vsel %vm475, %v468, 0.0
      %480 = vadd.xlane.f32.xlu0 %v479
      %v481 = vpop.xlane.xlu0 %480
      %v482 = vsel %vm475, %v469, 0.0
      %483 = vadd.xlane.f32.xlu0 %v482
      %v484 = vpop.xlane.xlu0 %483
      %v485 = vsel %vm475, %v470, 0.0
      %486 = vadd.xlane.f32.xlu0 %v485
      %v487 = vpop.xlane.xlu0 %486
      %v488 = vsel %vm475, %v471, 0.0
      %489 = vadd.xlane.f32.xlu0 %v488
      %v490 = vpop.xlane.xlu0 %489
      %v491 = vsel %vm475, %v472, 0.0
      %492 = vadd.xlane.f32.xlu0 %v491
      %v493 = vpop.xlane.xlu0 %492
      %v494 = vsel %vm475, %v473, 0.0
      %495 = vadd.xlane.f32.xlu0 %v494
      %v496 = vpop.xlane.xlu0 %495
      %v497 = vsel %vm475, %v474, 0.0
      %498 = vadd.xlane.f32.xlu0 %v497
      %v499 = vpop.xlane.xlu0 %498
      %v500 = vmul.f32 %v467, %v467
      %v501 = vmul.f32 %v468, %v468
      %v502 = vmul.f32 %v469, %v469
      %v503 = vmul.f32 %v470, %v470
      %v504 = vmul.f32 %v471, %v471
      %v505 = vmul.f32 %v472, %v472
      %v506 = vmul.f32 %v473, %v473
      %v507 = vmul.f32 %v474, %v474
      %v508 = vsel %vm475, %v500, 0.0
      %509 = vadd.xlane.f32.xlu0 %v508
      %v510 = vpop.xlane.xlu0 %509
      %v511 = vsel %vm475, %v501, 0.0
      %512 = vadd.xlane.f32.xlu0 %v511
      %v513 = vpop.xlane.xlu0 %512
      %v514 = vsel %vm475, %v502, 0.0
      %515 = vadd.xlane.f32.xlu0 %v514
      %v516 = vpop.xlane.xlu0 %515
      %v517 = vsel %vm475, %v503, 0.0
      %518 = vadd.xlane.f32.xlu0 %v517
      %v519 = vpop.xlane.xlu0 %518
      %v520 = vsel %vm475, %v504, 0.0
      %521 = vadd.xlane.f32.xlu0 %v520
      %v522 = vpop.xlane.xlu0 %521
      %v523 = vsel %vm475, %v505, 0.0
      %524 = vadd.xlane.f32.xlu0 %v523
      %v525 = vpop.xlane.xlu0 %524
      %v526 = vsel %vm475, %v506, 0.0
      %527 = vadd.xlane.f32.xlu0 %v526
      %v528 = vpop.xlane.xlu0 %527
      %v529 = vsel %vm475, %v507, 0.0
      %530 = vadd.xlane.f32.xlu0 %v529
      %v531 = vpop.xlane.xlu0 %530
      %v532 = vld [vmem:[%s4] sm:$0xff]
      %v533 = vld [vmem:[%s4 + $0x8] sm:$0xff]
      %v534 = vld [vmem:[%s4 + $0x10] sm:$0xff]
      %v535 = vld [vmem:[%s4 + $0x18] sm:$0xff]
      %v537 = vsel %vm475, %v532, 0
      %v540 = vsel %vm475, %v533, 0
      %v543 = vsel %vm475, %v534, 0
      %v546 = vsel %vm475, %v535, 0
      %548 = vmatprep.subr.mxu0 0.0
      %549 = vmatpush1.msra.mxu0 %v478
      %550 = vmatprep.subr.mxu0 0.0
      %551 = vmatpush1.msra.mxu0 %v481
      %552 = vmatprep.subr.mxu0 0.0
      %553 = vmatpush1.msra.mxu0 %v484
      %554 = vmatprep.subr.mxu0 0.0
      %555 = vmatpush1.msra.mxu0 %v487
      %556 = vmatprep.subr.mxu0 0.0
      %557 = vmatpush1.msra.mxu0 %v490
      %558 = vmatprep.subr.mxu0 0.0
      %559 = vmatpush1.msra.mxu0 %v493
      %560 = vmatprep.subr.mxu0 0.0
      %561 = vmatpush1.msra.mxu0 %v496
      %562 = vmatprep.subr.mxu0 0.0
      %563 = vmatpush1.msra.mxu0 %v499
      %564 = vmatprep.subr.mxu0 0.0
      %565 = vmatpush1.msra.mxu0 0.0
      %566 = vmatprep.subr.mxu0 0.0
      %567 = vmatpush1.msra.mxu0 0.0
      %568 = vmatprep.subr.mxu0 0.0
      %569 = vmatpush1.msra.mxu0 0.0
      %570 = vmatprep.subr.mxu0 0.0
      %571 = vmatpush1.msra.mxu0 0.0
      %572 = vmatprep.subr.mxu0 0.0
      %573 = vmatpush1.msra.mxu0 0.0
      %574 = vmatprep.subr.mxu0 0.0
      %575 = vmatpush1.msra.mxu0 0.0
      %576 = vmatprep.subr.mxu0 0.0
      %577 = vmatpush1.msra.mxu0 0.0
      %578 = vmatprep.subr.mxu0 0.0
      %579 = vmatpush1.msra.mxu0 0.0
      %580 = vmatprep.subr.mxu0 0.0
      %581 = vmatpush1.msra.mxu0 0.0
      %582 = vmatprep.subr.mxu0 0.0
      %583 = vmatpush1.msra.mxu0 0.0
      %584 = vmatprep.subr.mxu0 0.0
      %585 = vmatpush1.msra.mxu0 0.0
      %586 = vmatprep.subr.mxu0 0.0
      %587 = vmatpush1.msra.mxu0 0.0
      %588 = vmatprep.subr.mxu0 0.0
      %589 = vmatpush1.msra.mxu0 0.0
      %590 = vmatprep.subr.mxu0 0.0
      %591 = vmatpush1.msra.mxu0 0.0
      %592 = vmatprep.subr.mxu0 0.0
      %593 = vmatpush1.msra.mxu0 0.0
      %594 = vmatprep.subr.mxu0 0.0
      %595 = vmatpush1.msra.mxu0 0.0
      %596 = vmatprep.subr.mxu0 0.0
      %597 = vmatpush1.msra.mxu0 0.0
      %598 = vmatprep.subr.mxu0 0.0
      %599 = vmatpush1.msra.mxu0 0.0
      %600 = vmatprep.subr.mxu0 0.0
      %601 = vmatpush1.msra.mxu0 0.0
      %602 = vmatprep.subr.mxu0 0.0
      %603 = vmatpush1.msra.mxu0 0.0
      %604 = vmatprep.subr.mxu0 0.0
      %605 = vmatpush1.msra.mxu0 0.0
      %606 = vmatprep.subr.mxu0 0.0
      %607 = vmatpush1.msra.mxu0 0.0
      %608 = vmatprep.subr.mxu0 0.0
      %609 = vmatpush1.msra.mxu0 0.0
      %610 = vmatprep.subr.mxu0 0.0
      %611 = vmatpush1.msra.mxu0 0.0
      %612 = vmatprep.mubr.f32.mxu0 0.0
      %613 = vmatmul.mubr.f32.gmra.mrb[0].mxu0 %v537
      %v614 = vpop.f32.mrb[0].mxu0
      %v615 = vadd.f32 0.0, %v614
      %v616 = vpop.f32.mrb[0].mxu0
      %617 = vmatprep.mubr.f32.mxu0 0.0
      %618 = vmatmul.mubr.f32.gmra.mrb[0].mxu0 %v540
      %v619 = vpop.f32.mrb[0].mxu0
      %v620 = vadd.f32 0.0, %v619
      %v621 = vpop.f32.mrb[0].mxu0
      %622 = vmatprep.mubr.f32.mxu0 0.0
      %623 = vmatmul.mubr.f32.gmra.mrb[0].mxu0 %v543
      %v624 = vpop.f32.mrb[0].mxu0
      %v625 = vadd.f32 0.0, %v624
      %v626 = vpop.f32.mrb[0].mxu0
      %627 = vmatprep.mubr.f32.mxu0 0.0
      %628 = vmatmul.mubr.f32.gmra.mrb[0].mxu0 %v546
      %v629 = vpop.f32.mrb[0].mxu0
      %v630 = vadd.f32 0.0, %v629
      %v631 = vpop.f32.mrb[0].mxu0
      %632 = vdwg.mxu0
      %633 = vmatprep.subr.mxu0 0.0
      %634 = vmatpush1.msra.mxu0 %v510
      %635 = vmatprep.subr.mxu0 0.0
      %636 = vmatpush1.msra.mxu0 %v513
      %637 = vmatprep.subr.mxu0 0.0
      %638 = vmatpush1.msra.mxu0 %v516
      %639 = vmatprep.subr.mxu0 0.0
      %640 = vmatpush1.msra.mxu0 %v519
      %641 = vmatprep.subr.mxu0 0.0
      %642 = vmatpush1.msra.mxu0 %v522
      %643 = vmatprep.subr.mxu0 0.0
      %644 = vmatpush1.msra.mxu0 %v525
      %645 = vmatprep.subr.mxu0 0.0
      %646 = vmatpush1.msra.mxu0 %v528
      %647 = vmatprep.subr.mxu0 0.0
      %648 = vmatpush1.msra.mxu0 %v531
      %649 = vmatprep.subr.mxu0 0.0
      %650 = vmatpush1.msra.mxu0 0.0
      %651 = vmatprep.subr.mxu0 0.0
      %652 = vmatpush1.msra.mxu0 0.0
      %653 = vmatprep.subr.mxu0 0.0
      %654 = vmatpush1.msra.mxu0 0.0
      %655 = vmatprep.subr.mxu0 0.0
      %656 = vmatpush1.msra.mxu0 0.0
      %657 = vmatprep.subr.mxu0 0.0
      %658 = vmatpush1.msra.mxu0 0.0
      %659 = vmatprep.subr.mxu0 0.0
      %660 = vmatpush1.msra.mxu0 0.0
      %661 = vmatprep.subr.mxu0 0.0
      %662 = vmatpush1.msra.mxu0 0.0
      %663 = vmatprep.subr.mxu0 0.0
      %664 = vmatpush1.msra.mxu0 0.0
      %665 = vmatprep.subr.mxu0 0.0
      %666 = vmatpush1.msra.mxu0 0.0
      %667 = vmatprep.subr.mxu0 0.0
      %668 = vmatpush1.msra.mxu0 0.0
      %669 = vmatprep.subr.mxu0 0.0
      %670 = vmatpush1.msra.mxu0 0.0
      %671 = vmatprep.subr.mxu0 0.0
      %672 = vmatpush1.msra.mxu0 0.0
      %673 = vmatprep.subr.mxu0 0.0
      %674 = vmatpush1.msra.mxu0 0.0
      %675 = vmatprep.subr.mxu0 0.0
      %676 = vmatpush1.msra.mxu0 0.0
      %677 = vmatprep.subr.mxu0 0.0
      %678 = vmatpush1.msra.mxu0 0.0
      %679 = vmatprep.subr.mxu0 0.0
      %680 = vmatpush1.msra.mxu0 0.0
      %681 = vmatprep.subr.mxu0 0.0
      %682 = vmatpush1.msra.mxu0 0.0
      %683 = vmatprep.subr.mxu0 0.0
      %684 = vmatpush1.msra.mxu0 0.0
      %685 = vmatprep.subr.mxu0 0.0
      %686 = vmatpush1.msra.mxu0 0.0
      %687 = vmatprep.subr.mxu0 0.0
      %688 = vmatpush1.msra.mxu0 0.0
      %689 = vmatprep.subr.mxu0 0.0
      %690 = vmatpush1.msra.mxu0 0.0
      %691 = vmatprep.subr.mxu0 0.0
      %692 = vmatpush1.msra.mxu0 0.0
      %693 = vmatprep.subr.mxu0 0.0
      %694 = vmatpush1.msra.mxu0 0.0
      %695 = vmatprep.subr.mxu0 0.0
      %696 = vmatpush1.msra.mxu0 0.0
      %697 = vmatprep.mubr.f32.mxu0 0.0
      %698 = vmatmul.mubr.f32.gmra.mrb[0].mxu0 %v537
      %v699 = vpop.f32.mrb[0].mxu0
      %v700 = vadd.f32 0.0, %v699
      %v701 = vpop.f32.mrb[0].mxu0
      %702 = vmatprep.mubr.f32.mxu0 0.0
      %703 = vmatmul.mubr.f32.gmra.mrb[0].mxu0 %v540
      %v704 = vpop.f32.mrb[0].mxu0
      %v705 = vadd.f32 0.0, %v704
      %v706 = vpop.f32.mrb[0].mxu0
      %707 = vmatprep.mubr.f32.mxu0 0.0
      %708 = vmatmul.mubr.f32.gmra.mrb[0].mxu0 %v543
      %v709 = vpop.f32.mrb[0].mxu0
      %v710 = vadd.f32 0.0, %v709
      %v711 = vpop.f32.mrb[0].mxu0
      %712 = vmatprep.mubr.f32.mxu0 0.0
      %713 = vmatmul.mubr.f32.gmra.mrb[0].mxu0 %v546
      %v714 = vpop.f32.mrb[0].mxu0
      %v715 = vadd.f32 0.0, %v714
      %v716 = vpop.f32.mrb[0].mxu0
      %717 = vdwg.mxu0
      %v718 = vmul.f32 %v615, 0.0078125
      %v719 = vmul.f32 %v620, 0.0078125
      %v720 = vmul.f32 %v625, 0.0078125
      %v721 = vmul.f32 %v630, 0.0078125
      %v722 = vmul.f32 %v700, 0.0078125
      %v723 = vmul.f32 %v705, 0.0078125
      %v724 = vmul.f32 %v710, 0.0078125
      %v725 = vmul.f32 %v715, 0.0078125
      %v726 = vmul.f32 %v718, %v718
      %v727 = vmul.f32 %v719, %v719
      %v728 = vmul.f32 %v720, %v720
      %v729 = vmul.f32 %v721, %v721
      %v730 = vsub.f32 %v722, %v726
      %v731 = vsub.f32 %v723, %v727
      %v732 = vsub.f32 %v724, %v728
      %v733 = vsub.f32 %v725, %v729
      %v734 = vmax.f32 %v730, 0.0
      %v735 = vmax.f32 %v731, 0.0
      %v736 = vmax.f32 %v732, 0.0
      %v737 = vmax.f32 %v733, 0.0
      %v738 = vadd.f32 %v734, 1e-05
      %v739 = vadd.f32 %v735, 1e-05
      %v740 = vadd.f32 %v736, 1e-05
      %v741 = vadd.f32 %v737, 1e-05
      %v742 = vrsqrt.pop %v738
      %v743 = vrsqrt.pop %v739
      %v744 = vrsqrt.pop %v740
      %v745 = vrsqrt.pop %v741
      %v746 = vld [vmem:[%s3] sm:$0xff]
      %v747 = vld [vmem:[%s3 + $0x8] sm:$0xff]
      %v748 = vld [vmem:[%s3 + $0x10] sm:$0xff]
      %v749 = vld [vmem:[%s3 + $0x18] sm:$0xff]
      %v750 = vld [vmem:[%s3 + $0x20] sm:$0xff]
      %v751 = vld [vmem:[%s3 + $0x28] sm:$0xff]
      %v752 = vld [vmem:[%s3 + $0x30] sm:$0xff]
      %v753 = vld [vmem:[%s3 + $0x38] sm:$0xff]
      %vm754 = vcmask 261120
      %v756 = vsel %vm754, %v746, 0
      %v759 = vsel %vm754, %v747, 0
      %v762 = vsel %vm754, %v748, 0
      %v765 = vsel %vm754, %v749, 0
      %v768 = vsel %vm754, %v750, 0
      %v771 = vsel %vm754, %v751, 0
      %v774 = vsel %vm754, %v752, 0
      %v777 = vsel %vm754, %v753, 0
      %779 = vmatprep.subr.mxu0 0.0
      %780 = vmatpush1.msra.mxu0 %v718
      %781 = vmatprep.subr.mxu0 0.0
      %782 = vmatpush1.msra.mxu0 %v719
      %783 = vmatprep.subr.mxu0 0.0
      %784 = vmatpush1.msra.mxu0 %v720
      %785 = vmatprep.subr.mxu0 0.0
      %786 = vmatpush1.msra.mxu0 %v721
      %787 = vmatprep.subr.mxu0 0.0
      %788 = vmatpush1.msra.mxu0 0.0
      %789 = vmatprep.subr.mxu0 0.0
      %790 = vmatpush1.msra.mxu0 0.0
      %791 = vmatprep.subr.mxu0 0.0
      %792 = vmatpush1.msra.mxu0 0.0
      %793 = vmatprep.subr.mxu0 0.0
      %794 = vmatpush1.msra.mxu0 0.0
      %795 = vmatprep.subr.mxu0 0.0
      %796 = vmatpush1.msra.mxu0 0.0
      %797 = vmatprep.subr.mxu0 0.0
      %798 = vmatpush1.msra.mxu0 0.0
      %799 = vmatprep.subr.mxu0 0.0
      %800 = vmatpush1.msra.mxu0 0.0
      %801 = vmatprep.subr.mxu0 0.0
      %802 = vmatpush1.msra.mxu0 0.0
      %803 = vmatprep.subr.mxu0 0.0
      %804 = vmatpush1.msra.mxu0 0.0
      %805 = vmatprep.subr.mxu0 0.0
      %806 = vmatpush1.msra.mxu0 0.0
      %807 = vmatprep.subr.mxu0 0.0
      %808 = vmatpush1.msra.mxu0 0.0
      %809 = vmatprep.subr.mxu0 0.0
      %810 = vmatpush1.msra.mxu0 0.0
      %811 = vmatprep.subr.mxu0 0.0
      %812 = vmatpush1.msra.mxu0 0.0
      %813 = vmatprep.subr.mxu0 0.0
      %814 = vmatpush1.msra.mxu0 0.0
      %815 = vmatprep.subr.mxu0 0.0
      %816 = vmatpush1.msra.mxu0 0.0
      %817 = vmatprep.subr.mxu0 0.0
      %818 = vmatpush1.msra.mxu0 0.0
      %819 = vmatprep.subr.mxu0 0.0
      %820 = vmatpush1.msra.mxu0 0.0
      %821 = vmatprep.subr.mxu0 0.0
      %822 = vmatpush1.msra.mxu0 0.0
      %823 = vmatprep.subr.mxu0 0.0
      %824 = vmatpush1.msra.mxu0 0.0
      %825 = vmatprep.subr.mxu0 0.0
      %826 = vmatpush1.msra.mxu0 0.0
      %827 = vmatprep.subr.mxu0 0.0
      %828 = vmatpush1.msra.mxu0 0.0
      %829 = vmatprep.subr.mxu0 0.0
      %830 = vmatpush1.msra.mxu0 0.0
      %831 = vmatprep.subr.mxu0 0.0
      %832 = vmatpush1.msra.mxu0 0.0
      %833 = vmatprep.subr.mxu0 0.0
      %834 = vmatpush1.msra.mxu0 0.0
      %835 = vmatprep.subr.mxu0 0.0
      %836 = vmatpush1.msra.mxu0 0.0
      %837 = vmatprep.subr.mxu0 0.0
      %838 = vmatpush1.msra.mxu0 0.0
      %839 = vmatprep.subr.mxu0 0.0
      %840 = vmatpush1.msra.mxu0 0.0
      %841 = vmatprep.subr.mxu0 0.0
      %842 = vmatpush1.msra.mxu0 0.0
      %843 = vmatprep.mubr.f32.mxu0 0.0
      %844 = vmatmul.mubr.f32.gmra.mrb[0].mxu0 %v756
      %v845 = vpop.f32.mrb[0].mxu0
      %v846 = vadd.f32 0.0, %v845
      %v847 = vpop.f32.mrb[0].mxu0
      %848 = vmatprep.mubr.f32.mxu0 0.0
      %849 = vmatmul.mubr.f32.gmra.mrb[0].mxu0 %v759
      %v850 = vpop.f32.mrb[0].mxu0
      %v851 = vadd.f32 0.0, %v850
      %v852 = vpop.f32.mrb[0].mxu0
      %853 = vmatprep.mubr.f32.mxu0 0.0
      %854 = vmatmul.mubr.f32.gmra.mrb[0].mxu0 %v762
      %v855 = vpop.f32.mrb[0].mxu0
      %v856 = vadd.f32 0.0, %v855
      %v857 = vpop.f32.mrb[0].mxu0
      %858 = vmatprep.mubr.f32.mxu0 0.0
      %859 = vmatmul.mubr.f32.gmra.mrb[0].mxu0 %v765
      %v860 = vpop.f32.mrb[0].mxu0
      %v861 = vadd.f32 0.0, %v860
      %v862 = vpop.f32.mrb[0].mxu0
      %863 = vmatprep.mubr.f32.mxu0 0.0
      %864 = vmatmul.mubr.f32.gmra.mrb[0].mxu0 %v768
      %v865 = vpop.f32.mrb[0].mxu0
      %v866 = vadd.f32 0.0, %v865
      %v867 = vpop.f32.mrb[0].mxu0
      %868 = vmatprep.mubr.f32.mxu0 0.0
      %869 = vmatmul.mubr.f32.gmra.mrb[0].mxu0 %v771
      %v870 = vpop.f32.mrb[0].mxu0
      %v871 = vadd.f32 0.0, %v870
      %v872 = vpop.f32.mrb[0].mxu0
      %873 = vmatprep.mubr.f32.mxu0 0.0
      %874 = vmatmul.mubr.f32.gmra.mrb[0].mxu0 %v774
      %v875 = vpop.f32.mrb[0].mxu0
      %v876 = vadd.f32 0.0, %v875
      %v877 = vpop.f32.mrb[0].mxu0
      %878 = vmatprep.mubr.f32.mxu0 0.0
      %879 = vmatmul.mubr.f32.gmra.mrb[0].mxu0 %v777
      %v880 = vpop.f32.mrb[0].mxu0
      %v881 = vadd.f32 0.0, %v880
      %v882 = vpop.f32.mrb[0].mxu0
      %883 = vdwg.mxu0
      %884 = vmatprep.subr.mxu0 0.0
      %885 = vmatpush1.msra.mxu0 %v742
      %886 = vmatprep.subr.mxu0 0.0
      %887 = vmatpush1.msra.mxu0 %v743
      %888 = vmatprep.subr.mxu0 0.0
      %889 = vmatpush1.msra.mxu0 %v744
      %890 = vmatprep.subr.mxu0 0.0
      %891 = vmatpush1.msra.mxu0 %v745
      %892 = vmatprep.subr.mxu0 0.0
      %893 = vmatpush1.msra.mxu0 0.0
      %894 = vmatprep.subr.mxu0 0.0
      %895 = vmatpush1.msra.mxu0 0.0
      %896 = vmatprep.subr.mxu0 0.0
      %897 = vmatpush1.msra.mxu0 0.0
      %898 = vmatprep.subr.mxu0 0.0
      %899 = vmatpush1.msra.mxu0 0.0
      %900 = vmatprep.subr.mxu0 0.0
      %901 = vmatpush1.msra.mxu0 0.0
      %902 = vmatprep.subr.mxu0 0.0
      %903 = vmatpush1.msra.mxu0 0.0
      %904 = vmatprep.subr.mxu0 0.0
      %905 = vmatpush1.msra.mxu0 0.0
      %906 = vmatprep.subr.mxu0 0.0
      %907 = vmatpush1.msra.mxu0 0.0
      %908 = vmatprep.subr.mxu0 0.0
      %909 = vmatpush1.msra.mxu0 0.0
      %910 = vmatprep.subr.mxu0 0.0
      %911 = vmatpush1.msra.mxu0 0.0
      %912 = vmatprep.subr.mxu0 0.0
      %913 = vmatpush1.msra.mxu0 0.0
      %914 = vmatprep.subr.mxu0 0.0
      %915 = vmatpush1.msra.mxu0 0.0
      %916 = vmatprep.subr.mxu0 0.0
      %917 = vmatpush1.msra.mxu0 0.0
      %918 = vmatprep.subr.mxu0 0.0
      %919 = vmatpush1.msra.mxu0 0.0
      %920 = vmatprep.subr.mxu0 0.0
      %921 = vmatpush1.msra.mxu0 0.0
      %922 = vmatprep.subr.mxu0 0.0
      %923 = vmatpush1.msra.mxu0 0.0
      %924 = vmatprep.subr.mxu0 0.0
      %925 = vmatpush1.msra.mxu0 0.0
      %926 = vmatprep.subr.mxu0 0.0
      %927 = vmatpush1.msra.mxu0 0.0
      %928 = vmatprep.subr.mxu0 0.0
      %929 = vmatpush1.msra.mxu0 0.0
      %930 = vmatprep.subr.mxu0 0.0
      %931 = vmatpush1.msra.mxu0 0.0
      %932 = vmatprep.subr.mxu0 0.0
      %933 = vmatpush1.msra.mxu0 0.0
      %934 = vmatprep.subr.mxu0 0.0
      %935 = vmatpush1.msra.mxu0 0.0
      %936 = vmatprep.subr.mxu0 0.0
      %937 = vmatpush1.msra.mxu0 0.0
      %938 = vmatprep.subr.mxu0 0.0
      %939 = vmatpush1.msra.mxu0 0.0
      %940 = vmatprep.subr.mxu0 0.0
      %941 = vmatpush1.msra.mxu0 0.0
      %942 = vmatprep.subr.mxu0 0.0
      %943 = vmatpush1.msra.mxu0 0.0
      %944 = vmatprep.subr.mxu0 0.0
      %945 = vmatpush1.msra.mxu0 0.0
      %946 = vmatprep.subr.mxu0 0.0
      %947 = vmatpush1.msra.mxu0 0.0
      %948 = vmatprep.mubr.f32.mxu0 0.0
      %949 = vmatmul.mubr.f32.gmra.mrb[0].mxu0 %v756
      %v950 = vpop.f32.mrb[0].mxu0
      %v951 = vadd.f32 0.0, %v950
      %v952 = vpop.f32.mrb[0].mxu0
      %953 = vmatprep.mubr.f32.mxu0 0.0
      %954 = vmatmul.mubr.f32.gmra.mrb[0].mxu0 %v759
      %v955 = vpop.f32.mrb[0].mxu0
      %v956 = vadd.f32 0.0, %v955
      %v957 = vpop.f32.mrb[0].mxu0
      %958 = vmatprep.mubr.f32.mxu0 0.0
      %959 = vmatmul.mubr.f32.gmra.mrb[0].mxu0 %v762
      %v960 = vpop.f32.mrb[0].mxu0
      %v961 = vadd.f32 0.0, %v960
      %v962 = vpop.f32.mrb[0].mxu0
      %963 = vmatprep.mubr.f32.mxu0 0.0
      %964 = vmatmul.mubr.f32.gmra.mrb[0].mxu0 %v765
      %v965 = vpop.f32.mrb[0].mxu0
      %v966 = vadd.f32 0.0, %v965
      %v967 = vpop.f32.mrb[0].mxu0
      %968 = vmatprep.mubr.f32.mxu0 0.0
      %969 = vmatmul.mubr.f32.gmra.mrb[0].mxu0 %v768
      %v970 = vpop.f32.mrb[0].mxu0
      %v971 = vadd.f32 0.0, %v970
      %v972 = vpop.f32.mrb[0].mxu0
      %973 = vmatprep.mubr.f32.mxu0 0.0
      %974 = vmatmul.mubr.f32.gmra.mrb[0].mxu0 %v771
      %v975 = vpop.f32.mrb[0].mxu0
      %v976 = vadd.f32 0.0, %v975
      %v977 = vpop.f32.mrb[0].mxu0
      %978 = vmatprep.mubr.f32.mxu0 0.0
      %979 = vmatmul.mubr.f32.gmra.mrb[0].mxu0 %v774
      %v980 = vpop.f32.mrb[0].mxu0
      %v981 = vadd.f32 0.0, %v980
      %v982 = vpop.f32.mrb[0].mxu0
      %983 = vmatprep.mubr.f32.mxu0 0.0
      %984 = vmatmul.mubr.f32.gmra.mrb[0].mxu0 %v777
      %v985 = vpop.f32.mrb[0].mxu0
      %v986 = vadd.f32 0.0, %v985
      %v987 = vpop.f32.mrb[0].mxu0
      %988 = vdwg.mxu0
      %v989 = vld [vmem:[%s1] sm:$0xff]
      %v990 = vld [vmem:[%s1 + $0x8] sm:$0xff]
      %v991 = vld [vmem:[%s1 + $0x10] sm:$0xff]
      %v992 = vld [vmem:[%s1 + $0x18] sm:$0xff]
      %v993 = vld [vmem:[%s1 + $0x20] sm:$0xff]
      %v994 = vld [vmem:[%s1 + $0x28] sm:$0xff]
      %v995 = vld [vmem:[%s1 + $0x30] sm:$0xff]
      %v996 = vld [vmem:[%s1 + $0x38] sm:$0xff]
      %v997 = vmul.f32 %v951, %v989
      %v998 = vmul.f32 %v956, %v990
      %v999 = vmul.f32 %v961, %v991
      %v1000 = vmul.f32 %v966, %v992
      %v1001 = vmul.f32 %v971, %v993
      %v1002 = vmul.f32 %v976, %v994
      %v1003 = vmul.f32 %v981, %v995
      %v1004 = vmul.f32 %v986, %v996
      %v1005 = vld [vmem:[%s2] sm:$0xff]
      %v1006 = vld [vmem:[%s2 + $0x8] sm:$0xff]
      %v1007 = vld [vmem:[%s2 + $0x10] sm:$0xff]
      %v1008 = vld [vmem:[%s2 + $0x18] sm:$0xff]
      %v1009 = vld [vmem:[%s2 + $0x20] sm:$0xff]
      %v1010 = vld [vmem:[%s2 + $0x28] sm:$0xff]
      %v1011 = vld [vmem:[%s2 + $0x30] sm:$0xff]
      %v1012 = vld [vmem:[%s2 + $0x38] sm:$0xff]
      %v1013 = vmul.f32 %v846, %v997
      %v1014 = vmul.f32 %v851, %v998
      %v1015 = vmul.f32 %v856, %v999
      %v1016 = vmul.f32 %v861, %v1000
      %v1017 = vmul.f32 %v866, %v1001
      %v1018 = vmul.f32 %v871, %v1002
      %v1019 = vmul.f32 %v876, %v1003
      %v1020 = vmul.f32 %v881, %v1004
      %v1021 = vsub.f32 %v1005, %v1013
      %v1022 = vsub.f32 %v1006, %v1014
      %v1023 = vsub.f32 %v1007, %v1015
      %v1024 = vsub.f32 %v1008, %v1016
      %v1025 = vsub.f32 %v1009, %v1017
      %v1026 = vsub.f32 %v1010, %v1018
      %v1027 = vsub.f32 %v1011, %v1019
      %v1028 = vsub.f32 %v1012, %v1020
      %1030 = vset.pattern.permute.xlu0 0
      %1031 = vperm.xlu0 %1030, %v997
      %v1032 = vpop.permute.xlu0 %1031
      %1035 = vset.pattern.permute.xlu0 0
      %1036 = vperm.xlu0 %1035, %v998
      %v1037 = vpop.permute.xlu0 %1036
      %1040 = vset.pattern.permute.xlu0 0
      %1041 = vperm.xlu0 %1040, %v999
      %v1042 = vpop.permute.xlu0 %1041
      %1045 = vset.pattern.permute.xlu0 0
      %1046 = vperm.xlu0 %1045, %v1000
      %v1047 = vpop.permute.xlu0 %1046
      %1050 = vset.pattern.permute.xlu0 0
      %1051 = vperm.xlu0 %1050, %v1001
      %v1052 = vpop.permute.xlu0 %1051
      %1055 = vset.pattern.permute.xlu0 0
      %1056 = vperm.xlu0 %1055, %v1002
      %v1057 = vpop.permute.xlu0 %1056
      %1060 = vset.pattern.permute.xlu0 0
      %1061 = vperm.xlu0 %1060, %v1003
      %v1062 = vpop.permute.xlu0 %1061
      %1065 = vset.pattern.permute.xlu0 0
      %1066 = vperm.xlu0 %1065, %v1004
      %v1067 = vpop.permute.xlu0 %1066
      %v1069 = vmul.f32 %v467, %v1032
      %v1070 = vmul.f32 %v468, %v1037
      %v1071 = vmul.f32 %v469, %v1042
      %v1072 = vmul.f32 %v470, %v1047
      %v1073 = vmul.f32 %v471, %v1052
      %v1074 = vmul.f32 %v472, %v1057
      %v1075 = vmul.f32 %v473, %v1062
      %v1076 = vmul.f32 %v474, %v1067
      %1078 = vset.pattern.permute.xlu0 0
      %1079 = vperm.xlu0 %1078, %v1021
      %v1080 = vpop.permute.xlu0 %1079
      %1083 = vset.pattern.permute.xlu0 0
      %1084 = vperm.xlu0 %1083, %v1022
      %v1085 = vpop.permute.xlu0 %1084
      %1088 = vset.pattern.permute.xlu0 0
      %1089 = vperm.xlu0 %1088, %v1023
      %v1090 = vpop.permute.xlu0 %1089
      %1093 = vset.pattern.permute.xlu0 0
      %1094 = vperm.xlu0 %1093, %v1024
      %v1095 = vpop.permute.xlu0 %1094
      %1098 = vset.pattern.permute.xlu0 0
      %1099 = vperm.xlu0 %1098, %v1025
      %v1100 = vpop.permute.xlu0 %1099
      %1103 = vset.pattern.permute.xlu0 0
      %1104 = vperm.xlu0 %1103, %v1026
      %v1105 = vpop.permute.xlu0 %1104
      %1108 = vset.pattern.permute.xlu0 0
      %1109 = vperm.xlu0 %1108, %v1027
      %v1110 = vpop.permute.xlu0 %1109
      %1113 = vset.pattern.permute.xlu0 0
      %1114 = vperm.xlu0 %1113, %v1028
      %v1115 = vpop.permute.xlu0 %1114
      %v1117 = vadd.f32 %v1069, %v1080
      %v1118 = vadd.f32 %v1070, %v1085
      %v1119 = vadd.f32 %v1071, %v1090
      %v1120 = vadd.f32 %v1072, %v1095
      %v1121 = vadd.f32 %v1073, %v1100
      %v1122 = vadd.f32 %v1074, %v1105
      %v1123 = vadd.f32 %v1075, %v1110
      %v1124 = vadd.f32 %v1076, %v1115
      %v1125 = vpack.c.bf16 %v1118, %v1117
      %v1126 = vpack.c.bf16 %v1120, %v1119
      %v1127 = vpack.c.bf16 %v1122, %v1121
      %v1128 = vpack.c.bf16 %v1124, %v1123
      %v1129 = vld [vmem:[%s5] sm:$0xf]
      %v1130 = vld [vmem:[%s5 + $0x4] sm:$0xf]
      %v1131 = vld [vmem:[%s5 + $0x8] sm:$0xf]
      %v1132 = vld [vmem:[%s5 + $0xc] sm:$0xf]
      %v1133 = vld [vmem:[%s5 + $0x10] sm:$0xf]
      %v1134 = vld [vmem:[%s5 + $0x14] sm:$0xf]
      %v1135 = vld [vmem:[%s5 + $0x18] sm:$0xf]
      %v1136 = vld [vmem:[%s5 + $0x1c] sm:$0xf]
      %v1137 = vld [vmem:[%s6] sm:$0x1]
      %v1139 = vlaneseq
      %v1140 = vshrl.u32 %v1139, 7
      %v1141 = vsub.s32 0, %v1140
      %v1142 = vrot.slane %v1137, %v1141
      %1144 = vxpose.xlu0.c.b16.start [1/8] %v1125, 128
      %1145 = vxpose.xlu0.c.b16.cont [2/8] %v1126, 128
      %1146 = vxpose.xlu0.c.b16.cont [3/8] %v1127, 128
      %1147 = vxpose.xlu0.c.b16.cont [4/8] %v1128, 128
      %1148 = vxpose.xlu0.c.b16.cont [5/8] 0, 128
      %1149 = vxpose.xlu0.c.b16.cont [6/8] 0, 128
      %1150 = vxpose.xlu0.c.b16.cont [7/8] 0, 128
      %1151 = vxpose.xlu0.c.b16.end [8/8] 0, 128
      %v1152 = vpop.trf.xlu0
      %v1153 = vpop.trf.xlu0
      %v1154 = vpop.trf.xlu0
      %v1155 = vpop.trf.xlu0
      %v1156 = vpop.trf.xlu0
      %v1157 = vpop.trf.xlu0
      %v1158 = vpop.trf.xlu0
      %v1159 = vpop.trf.xlu0
      %v1168 = vunpack.c.l.b16 %v1129
      %v1169 = vunpack.c.l.b16 %v1130
      %v1170 = vunpack.c.l.b16 %v1131
      %v1171 = vunpack.c.l.b16 %v1132
      %v1172 = vunpack.c.l.b16 %v1133
      %v1173 = vunpack.c.l.b16 %v1134
      %v1174 = vunpack.c.l.b16 %v1135
      %v1175 = vunpack.c.l.b16 %v1136
      %v1176 = vpack.c.b16 %v1169, %v1168
      %v1177 = vpack.c.b16 %v1171, %v1170
      %v1178 = vpack.c.b16 %v1173, %v1172
      %v1179 = vpack.c.b16 %v1175, %v1174
      %v1185 = vsel %vm475, %v1152, 0
      %v1188 = vsel %vm475, %v1153, 0
      %v1191 = vsel %vm475, %v1154, 0
      %v1194 = vsel %vm475, %v1155, 0
      %1196 = vmatprep.subr.bf16.mxu0 0
      %1197 = vmatpush1.bf16.msra.mxu0 %v1176
      %1198 = vmatprep.subr.bf16.mxu0 0
      %1199 = vmatpush1.bf16.msra.mxu0 %v1177
      %1200 = vmatprep.subr.bf16.mxu0 0
      %1201 = vmatpush1.bf16.msra.mxu0 %v1178
      %1202 = vmatprep.subr.bf16.mxu0 0
      %1203 = vmatpush1.bf16.msra.mxu0 %v1179
      %1204 = vmatprep.subr.bf16.mxu0 0
      %1205 = vmatpush1.bf16.msra.mxu0 0
      %1206 = vmatprep.subr.bf16.mxu0 0
      %1207 = vmatpush1.bf16.msra.mxu0 0
      %1208 = vmatprep.subr.bf16.mxu0 0
      %1209 = vmatpush1.bf16.msra.mxu0 0
      %1210 = vmatprep.subr.bf16.mxu0 0
      %1211 = vmatpush1.bf16.msra.mxu0 0
      %1212 = vmatprep.subr.bf16.mxu0 0
      %1213 = vmatpush1.bf16.msra.mxu0 0
      %1214 = vmatprep.subr.bf16.mxu0 0
      %1215 = vmatpush1.bf16.msra.mxu0 0
      %1216 = vmatprep.subr.bf16.mxu0 0
      %1217 = vmatpush1.bf16.msra.mxu0 0
      %1218 = vmatprep.subr.bf16.mxu0 0
      %1219 = vmatpush1.bf16.msra.mxu0 0
      %1220 = vmatprep.subr.bf16.mxu0 0
      %1221 = vmatpush1.bf16.msra.mxu0 0
      %1222 = vmatprep.subr.bf16.mxu0 0
      %1223 = vmatpush1.bf16.msra.mxu0 0
      %1224 = vmatprep.subr.bf16.mxu0 0
      %1225 = vmatpush1.bf16.msra.mxu0 0
      %1226 = vmatprep.subr.bf16.mxu0 0
      %1227 = vmatpush1.bf16.msra.mxu0 0
      %1228 = vmatprep.mubr.bf16.mxu0 0
      %1229 = vmatmul.mubr.bf16.gmra.mrb[0].mxu0 %v1185
      %v1230 = vpop.f32.mrb[0].mxu0
      %v1231 = vadd.f32 %v1142, %v1230
      %v1232 = vpop.f32.mrb[0].mxu0
      %v1233 = vpop.f32.mrb[0].mxu0
      %v1234 = vadd.f32 %v1142, %v1233
      %v1235 = vpop.f32.mrb[0].mxu0
      %1236 = vmatprep.mubr.bf16.mxu0 0
      %1237 = vmatmul.mubr.bf16.gmra.mrb[0].mxu0 %v1188
      %v1238 = vpop.f32.mrb[0].mxu0
      %v1239 = vadd.f32 %v1142, %v1238
      %v1240 = vpop.f32.mrb[0].mxu0
      %v1241 = vpop.f32.mrb[0].mxu0
      %v1242 = vadd.f32 %v1142, %v1241
      %v1243 = vpop.f32.mrb[0].mxu0
      %1244 = vmatprep.mubr.bf16.mxu0 0
      %1245 = vmatmul.mubr.bf16.gmra.mrb[0].mxu0 %v1191
      %v1246 = vpop.f32.mrb[0].mxu0
      %v1247 = vadd.f32 %v1142, %v1246
      %v1248 = vpop.f32.mrb[0].mxu0
      %v1249 = vpop.f32.mrb[0].mxu0
      %v1250 = vadd.f32 %v1142, %v1249
      %v1251 = vpop.f32.mrb[0].mxu0
      %1252 = vmatprep.mubr.bf16.mxu0 0
      %1253 = vmatmul.mubr.bf16.gmra.mrb[0].mxu0 %v1194
      %v1254 = vpop.f32.mrb[0].mxu0
      %v1255 = vadd.f32 %v1142, %v1254
      %v1256 = vpop.f32.mrb[0].mxu0
      %v1257 = vpop.f32.mrb[0].mxu0
      %v1258 = vadd.f32 %v1142, %v1257
      %v1259 = vpop.f32.mrb[0].mxu0
      %1260 = vdwg.mxu0
      %v1261 = vpack.c.bf16 %v1234, %v1231
      %v1262 = vpack.c.bf16 %v1242, %v1239
      %v1263 = vpack.c.bf16 %v1250, %v1247
      %v1264 = vpack.c.bf16 %v1258, %v1255
      %v1269 = vunpack.c.l.b16 %v1261
      %v1270 = vunpack.c.h.b16 %v1261
      %v1271 = vunpack.c.l.b16 %v1262
      %v1272 = vunpack.c.h.b16 %v1262
      %v1273 = vunpack.c.l.b16 %v1263
      %v1274 = vunpack.c.h.b16 %v1263
      %v1275 = vunpack.c.l.b16 %v1264
      %v1276 = vunpack.c.h.b16 %v1264
      %v1277 = vpack.c.b16 %v1269, %v1269
      %v1278 = vpack.c.b16 %v1270, %v1270
      %v1279 = vpack.c.b16 %v1271, %v1271
      %v1280 = vpack.c.b16 %v1272, %v1272
      %v1281 = vpack.c.b16 %v1273, %v1273
      %v1282 = vpack.c.b16 %v1274, %v1274
      %v1283 = vpack.c.b16 %v1275, %v1275
      %v1284 = vpack.c.b16 %v1276, %v1276
      %vm1293 = vcmask 257024
      %1294 = vst.msk [vmem:[%s455] sm:$0xf] %vm1293, %v1277
      %1295 = vst.msk [vmem:[%s455 + $0x4] sm:$0xf] %vm1293, %v1278
      %1296 = vst.msk [vmem:[%s455 + $0x8] sm:$0xf] %vm1293, %v1279
      %1297 = vst.msk [vmem:[%s455 + $0xc] sm:$0xf] %vm1293, %v1280
      %1298 = vst.msk [vmem:[%s455 + $0x10] sm:$0xf] %vm1293, %v1281
      %1299 = vst.msk [vmem:[%s455 + $0x14] sm:$0xf] %vm1293, %v1282
      %1300 = vst.msk [vmem:[%s455 + $0x18] sm:$0xf] %vm1293, %v1283
      %1301 = vst.msk [vmem:[%s455 + $0x1c] sm:$0xf] %vm1293, %v1284
      %v1302 = vld [vmem:[%s7] sm:$0xf]
      %v1303 = vld [vmem:[%s7 + $0x4] sm:$0xf]
      %v1304 = vld [vmem:[%s7 + $0x8] sm:$0xf]
      %v1305 = vld [vmem:[%s7 + $0xc] sm:$0xf]
      %v1306 = vld [vmem:[%s7 + $0x10] sm:$0xf]
      %v1307 = vld [vmem:[%s7 + $0x14] sm:$0xf]
      %v1308 = vld [vmem:[%s7 + $0x18] sm:$0xf]
      %v1309 = vld [vmem:[%s7 + $0x1c] sm:$0xf]
      %v1310 = vld [vmem:[%s8] sm:$0x1]
      %v1312 = vlaneseq
      %v1313 = vshrl.u32 %v1312, 7
      %v1314 = vsub.s32 0, %v1313
      %v1315 = vrot.slane %v1310, %v1314
      %v1325 = vunpack.c.l.b16 %v1302
      %v1326 = vunpack.c.l.b16 %v1303
      %v1327 = vunpack.c.l.b16 %v1304
      %v1328 = vunpack.c.l.b16 %v1305
      %v1329 = vunpack.c.l.b16 %v1306
      %v1330 = vunpack.c.l.b16 %v1307
      %v1331 = vunpack.c.l.b16 %v1308
      %v1332 = vunpack.c.l.b16 %v1309
      %v1333 = vpack.c.b16 %v1326, %v1325
      %v1334 = vpack.c.b16 %v1328, %v1327
      %v1335 = vpack.c.b16 %v1330, %v1329
      %v1336 = vpack.c.b16 %v1332, %v1331
      %1341 = vmatprep.subr.bf16.mxu0 0
      %1342 = vmatpush1.bf16.msra.mxu0 %v1333
      %1343 = vmatprep.subr.bf16.mxu0 0
      %1344 = vmatpush1.bf16.msra.mxu0 %v1334
      %1345 = vmatprep.subr.bf16.mxu0 0
      %1346 = vmatpush1.bf16.msra.mxu0 %v1335
      %1347 = vmatprep.subr.bf16.mxu0 0
      %1348 = vmatpush1.bf16.msra.mxu0 %v1336
      %1349 = vmatprep.subr.bf16.mxu0 0
      %1350 = vmatpush1.bf16.msra.mxu0 0
      %1351 = vmatprep.subr.bf16.mxu0 0
      %1352 = vmatpush1.bf16.msra.mxu0 0
      %1353 = vmatprep.subr.bf16.mxu0 0
      %1354 = vmatpush1.bf16.msra.mxu0 0
      %1355 = vmatprep.subr.bf16.mxu0 0
      %1356 = vmatpush1.bf16.msra.mxu0 0
      %1357 = vmatprep.subr.bf16.mxu0 0
      %1358 = vmatpush1.bf16.msra.mxu0 0
      %1359 = vmatprep.subr.bf16.mxu0 0
      %1360 = vmatpush1.bf16.msra.mxu0 0
      %1361 = vmatprep.subr.bf16.mxu0 0
      %1362 = vmatpush1.bf16.msra.mxu0 0
      %1363 = vmatprep.subr.bf16.mxu0 0
      %1364 = vmatpush1.bf16.msra.mxu0 0
      %1365 = vmatprep.subr.bf16.mxu0 0
      %1366 = vmatpush1.bf16.msra.mxu0 0
      %1367 = vmatprep.subr.bf16.mxu0 0
      %1368 = vmatpush1.bf16.msra.mxu0 0
      %1369 = vmatprep.subr.bf16.mxu0 0
      %1370 = vmatpush1.bf16.msra.mxu0 0
      %1371 = vmatprep.subr.bf16.mxu0 0
      %1372 = vmatpush1.bf16.msra.mxu0 0
      %1373 = vmatprep.mubr.bf16.mxu0 0
      %1374 = vmatmul.mubr.bf16.gmra.mrb[0].mxu0 %v1185
      %v1375 = vpop.f32.mrb[0].mxu0
      %v1376 = vadd.f32 %v1315, %v1375
      %v1377 = vpop.f32.mrb[0].mxu0
      %v1378 = vpop.f32.mrb[0].mxu0
      %v1379 = vadd.f32 %v1315, %v1378
      %v1380 = vpop.f32.mrb[0].mxu0
      %1381 = vmatprep.mubr.bf16.mxu0 0
      %1382 = vmatmul.mubr.bf16.gmra.mrb[0].mxu0 %v1188
      %v1383 = vpop.f32.mrb[0].mxu0
      %v1384 = vadd.f32 %v1315, %v1383
      %v1385 = vpop.f32.mrb[0].mxu0
      %v1386 = vpop.f32.mrb[0].mxu0
      %v1387 = vadd.f32 %v1315, %v1386
      %v1388 = vpop.f32.mrb[0].mxu0
      %1389 = vmatprep.mubr.bf16.mxu0 0
      %1390 = vmatmul.mubr.bf16.gmra.mrb[0].mxu0 %v1191
      %v1391 = vpop.f32.mrb[0].mxu0
      %v1392 = vadd.f32 %v1315, %v1391
      %v1393 = vpop.f32.mrb[0].mxu0
      %v1394 = vpop.f32.mrb[0].mxu0
      %v1395 = vadd.f32 %v1315, %v1394
      %v1396 = vpop.f32.mrb[0].mxu0
      %1397 = vmatprep.mubr.bf16.mxu0 0
      %1398 = vmatmul.mubr.bf16.gmra.mrb[0].mxu0 %v1194
      %v1399 = vpop.f32.mrb[0].mxu0
      %v1400 = vadd.f32 %v1315, %v1399
      %v1401 = vpop.f32.mrb[0].mxu0
      %v1402 = vpop.f32.mrb[0].mxu0
      %v1403 = vadd.f32 %v1315, %v1402
      %v1404 = vpop.f32.mrb[0].mxu0
      %1405 = vdwg.mxu0
      %v1406 = vpack.c.bf16 %v1379, %v1376
      %v1407 = vpack.c.bf16 %v1387, %v1384
      %v1408 = vpack.c.bf16 %v1395, %v1392
      %v1409 = vpack.c.bf16 %v1403, %v1400
      %v1414 = vunpack.c.l.b16 %v1406
      %v1415 = vunpack.c.h.b16 %v1406
      %v1416 = vunpack.c.l.b16 %v1407
      %v1417 = vunpack.c.h.b16 %v1407
      %v1418 = vunpack.c.l.b16 %v1408
      %v1419 = vunpack.c.h.b16 %v1408
      %v1420 = vunpack.c.l.b16 %v1409
      %v1421 = vunpack.c.h.b16 %v1409
      %v1422 = vpack.c.b16 %v1414, %v1414
      %v1423 = vpack.c.b16 %v1415, %v1415
      %v1424 = vpack.c.b16 %v1416, %v1416
      %v1425 = vpack.c.b16 %v1417, %v1417
      %v1426 = vpack.c.b16 %v1418, %v1418
      %v1427 = vpack.c.b16 %v1419, %v1419
      %v1428 = vpack.c.b16 %v1420, %v1420
      %v1429 = vpack.c.b16 %v1421, %v1421
      %1438 = vst.msk [vmem:[%s460] sm:$0xf] %vm1293, %v1422
      %1439 = vst.msk [vmem:[%s460 + $0x4] sm:$0xf] %vm1293, %v1423
      %1440 = vst.msk [vmem:[%s460 + $0x8] sm:$0xf] %vm1293, %v1424
      %1441 = vst.msk [vmem:[%s460 + $0xc] sm:$0xf] %vm1293, %v1425
      %1442 = vst.msk [vmem:[%s460 + $0x10] sm:$0xf] %vm1293, %v1426
      %1443 = vst.msk [vmem:[%s460 + $0x14] sm:$0xf] %vm1293, %v1427
      %1444 = vst.msk [vmem:[%s460 + $0x18] sm:$0xf] %vm1293, %v1428
      %1445 = vst.msk [vmem:[%s460 + $0x1c] sm:$0xf] %vm1293, %v1429
      %v1446 = vld [vmem:[%s9] sm:$0xf]
      %v1447 = vld [vmem:[%s9 + $0x4] sm:$0xf]
      %v1448 = vld [vmem:[%s9 + $0x8] sm:$0xf]
      %v1449 = vld [vmem:[%s9 + $0xc] sm:$0xf]
      %v1450 = vld [vmem:[%s9 + $0x10] sm:$0xf]
      %v1451 = vld [vmem:[%s9 + $0x14] sm:$0xf]
      %v1452 = vld [vmem:[%s9 + $0x18] sm:$0xf]
      %v1453 = vld [vmem:[%s9 + $0x1c] sm:$0xf]
      %v1454 = vld [vmem:[%s10] sm:$0x1]
      %v1456 = vlaneseq
      %v1457 = vshrl.u32 %v1456, 7
      %v1458 = vsub.s32 0, %v1457
      %v1459 = vrot.slane %v1454, %v1458
      %v1469 = vunpack.c.l.b16 %v1446
      %v1470 = vunpack.c.l.b16 %v1447
      %v1471 = vunpack.c.l.b16 %v1448
      %v1472 = vunpack.c.l.b16 %v1449
      %v1473 = vunpack.c.l.b16 %v1450
      %v1474 = vunpack.c.l.b16 %v1451
      %v1475 = vunpack.c.l.b16 %v1452
      %v1476 = vunpack.c.l.b16 %v1453
      %v1477 = vpack.c.b16 %v1470, %v1469
      %v1478 = vpack.c.b16 %v1472, %v1471
      %v1479 = vpack.c.b16 %v1474, %v1473
      %v1480 = vpack.c.b16 %v1476, %v1475
      %1485 = vmatprep.subr.bf16.mxu0 0
      %1486 = vmatpush1.bf16.msra.mxu0 %v1477
      %1487 = vmatprep.subr.bf16.mxu0 0
      %1488 = vmatpush1.bf16.msra.mxu0 %v1478
      %1489 = vmatprep.subr.bf16.mxu0 0
      %1490 = vmatpush1.bf16.msra.mxu0 %v1479
      %1491 = vmatprep.subr.bf16.mxu0 0
      %1492 = vmatpush1.bf16.msra.mxu0 %v1480
      %1493 = vmatprep.subr.bf16.mxu0 0
      %1494 = vmatpush1.bf16.msra.mxu0 0
      %1495 = vmatprep.subr.bf16.mxu0 0
      %1496 = vmatpush1.bf16.msra.mxu0 0
      %1497 = vmatprep.subr.bf16.mxu0 0
      %1498 = vmatpush1.bf16.msra.mxu0 0
      %1499 = vmatprep.subr.bf16.mxu0 0
      %1500 = vmatpush1.bf16.msra.mxu0 0
      %1501 = vmatprep.subr.bf16.mxu0 0
      %1502 = vmatpush1.bf16.msra.mxu0 0
      %1503 = vmatprep.subr.bf16.mxu0 0
      %1504 = vmatpush1.bf16.msra.mxu0 0
      %1505 = vmatprep.subr.bf16.mxu0 0
      %1506 = vmatpush1.bf16.msra.mxu0 0
      %1507 = vmatprep.subr.bf16.mxu0 0
      %1508 = vmatpush1.bf16.msra.mxu0 0
      %1509 = vmatprep.subr.bf16.mxu0 0
      %1510 = vmatpush1.bf16.msra.mxu0 0
      %1511 = vmatprep.subr.bf16.mxu0 0
      %1512 = vmatpush1.bf16.msra.mxu0 0
      %1513 = vmatprep.subr.bf16.mxu0 0
      %1514 = vmatpush1.bf16.msra.mxu0 0
      %1515 = vmatprep.subr.bf16.mxu0 0
      %1516 = vmatpush1.bf16.msra.mxu0 0
      %1517 = vmatprep.mubr.bf16.mxu0 0
      %1518 = vmatmul.mubr.bf16.gmra.mrb[0].mxu0 %v1185
      %v1519 = vpop.f32.mrb[0].mxu0
      %v1520 = vadd.f32 %v1459, %v1519
      %v1521 = vpop.f32.mrb[0].mxu0
      %v1522 = vpop.f32.mrb[0].mxu0
      %v1523 = vadd.f32 %v1459, %v1522
      %v1524 = vpop.f32.mrb[0].mxu0
      %1525 = vmatprep.mubr.bf16.mxu0 0
      %1526 = vmatmul.mubr.bf16.gmra.mrb[0].mxu0 %v1188
      %v1527 = vpop.f32.mrb[0].mxu0
      %v1528 = vadd.f32 %v1459, %v1527
      %v1529 = vpop.f32.mrb[0].mxu0
      %v1530 = vpop.f32.mrb[0].mxu0
      %v1531 = vadd.f32 %v1459, %v1530
      %v1532 = vpop.f32.mrb[0].mxu0
      %1533 = vmatprep.mubr.bf16.mxu0 0
      %1534 = vmatmul.mubr.bf16.gmra.mrb[0].mxu0 %v1191
      %v1535 = vpop.f32.mrb[0].mxu0
      %v1536 = vadd.f32 %v1459, %v1535
      %v1537 = vpop.f32.mrb[0].mxu0
      %v1538 = vpop.f32.mrb[0].mxu0
      %v1539 = vadd.f32 %v1459, %v1538
      %v1540 = vpop.f32.mrb[0].mxu0
      %1541 = vmatprep.mubr.bf16.mxu0 0
      %1542 = vmatmul.mubr.bf16.gmra.mrb[0].mxu0 %v1194
      %v1543 = vpop.f32.mrb[0].mxu0
      %v1544 = vadd.f32 %v1459, %v1543
      %v1545 = vpop.f32.mrb[0].mxu0
      %v1546 = vpop.f32.mrb[0].mxu0
      %v1547 = vadd.f32 %v1459, %v1546
      %v1548 = vpop.f32.mrb[0].mxu0
      %1549 = vdwg.mxu0
      %v1550 = vpack.c.bf16 %v1523, %v1520
      %v1551 = vpack.c.bf16 %v1531, %v1528
      %v1552 = vpack.c.bf16 %v1539, %v1536
      %v1553 = vpack.c.bf16 %v1547, %v1544
      %v1558 = vunpack.c.l.b16 %v1550
      %v1559 = vunpack.c.h.b16 %v1550
      %v1560 = vunpack.c.l.b16 %v1551
      %v1561 = vunpack.c.h.b16 %v1551
      %v1562 = vunpack.c.l.b16 %v1552
      %v1563 = vunpack.c.h.b16 %v1552
      %v1564 = vunpack.c.l.b16 %v1553
      %v1565 = vunpack.c.h.b16 %v1553
      %v1566 = vpack.c.b16 %v1558, %v1558
      %v1567 = vpack.c.b16 %v1559, %v1559
      %v1568 = vpack.c.b16 %v1560, %v1560
      %v1569 = vpack.c.b16 %v1561, %v1561
      %v1570 = vpack.c.b16 %v1562, %v1562
      %v1571 = vpack.c.b16 %v1563, %v1563
      %v1572 = vpack.c.b16 %v1564, %v1564
      %v1573 = vpack.c.b16 %v1565, %v1565
      %1582 = vst.msk [vmem:[%s465] sm:$0xf] %vm1293, %v1566
      %1583 = vst.msk [vmem:[%s465 + $0x4] sm:$0xf] %vm1293, %v1567
      %1584 = vst.msk [vmem:[%s465 + $0x8] sm:$0xf] %vm1293, %v1568
      %1585 = vst.msk [vmem:[%s465 + $0xc] sm:$0xf] %vm1293, %v1569
      %1586 = vst.msk [vmem:[%s465 + $0x10] sm:$0xf] %vm1293, %v1570
      %1587 = vst.msk [vmem:[%s465 + $0x14] sm:$0xf] %vm1293, %v1571
      %1588 = vst.msk [vmem:[%s465 + $0x18] sm:$0xf] %vm1293, %v1572
      %1589 = vst.msk [vmem:[%s465 + $0x1c] sm:$0xf] %vm1293, %v1573
      %s1590 = scalar_lea.vmem %s5, 32
      %v1591 = vld [vmem:[%s1590] sm:$0xf]
      %v1592 = vld [vmem:[%s1590 + $0x4] sm:$0xf]
      %v1593 = vld [vmem:[%s1590 + $0x8] sm:$0xf]
      %v1594 = vld [vmem:[%s1590 + $0xc] sm:$0xf]
      %v1595 = vld [vmem:[%s1590 + $0x10] sm:$0xf]
      %v1596 = vld [vmem:[%s1590 + $0x14] sm:$0xf]
      %v1597 = vld [vmem:[%s1590 + $0x18] sm:$0xf]
      %v1598 = vld [vmem:[%s1590 + $0x1c] sm:$0xf]
      %s1599 = scalar_lea.vmem %s6, 1
      %v1600 = vld [vmem:[%s1599] sm:$0x1]
      %v1602 = vlaneseq
      %v1603 = vshrl.u32 %v1602, 7
      %v1604 = vsub.s32 0, %v1603
      %v1605 = vrot.slane %v1600, %v1604
      %v1615 = vunpack.c.l.b16 %v1591
      %v1616 = vunpack.c.l.b16 %v1592
      %v1617 = vunpack.c.l.b16 %v1593
      %v1618 = vunpack.c.l.b16 %v1594
      %v1619 = vunpack.c.l.b16 %v1595
      %v1620 = vunpack.c.l.b16 %v1596
      %v1621 = vunpack.c.l.b16 %v1597
      %v1622 = vunpack.c.l.b16 %v1598
      %v1623 = vpack.c.b16 %v1616, %v1615
      %v1624 = vpack.c.b16 %v1618, %v1617
      %v1625 = vpack.c.b16 %v1620, %v1619
      %v1626 = vpack.c.b16 %v1622, %v1621
      %1631 = vmatprep.subr.bf16.mxu0 0
      %1632 = vmatpush1.bf16.msra.mxu0 %v1623
      %1633 = vmatprep.subr.bf16.mxu0 0
      %1634 = vmatpush1.bf16.msra.mxu0 %v1624
      %1635 = vmatprep.subr.bf16.mxu0 0
      %1636 = vmatpush1.bf16.msra.mxu0 %v1625
      %1637 = vmatprep.subr.bf16.mxu0 0
      %1638 = vmatpush1.bf16.msra.mxu0 %v1626
      %1639 = vmatprep.subr.bf16.mxu0 0
      %1640 = vmatpush1.bf16.msra.mxu0 0
      %1641 = vmatprep.subr.bf16.mxu0 0
      %1642 = vmatpush1.bf16.msra.mxu0 0
      %1643 = vmatprep.subr.bf16.mxu0 0
      %1644 = vmatpush1.bf16.msra.mxu0 0
      %1645 = vmatprep.subr.bf16.mxu0 0
      %1646 = vmatpush1.bf16.msra.mxu0 0
      %1647 = vmatprep.subr.bf16.mxu0 0
      %1648 = vmatpush1.bf16.msra.mxu0 0
      %1649 = vmatprep.subr.bf16.mxu0 0
      %1650 = vmatpush1.bf16.msra.mxu0 0
      %1651 = vmatprep.subr.bf16.mxu0 0
      %1652 = vmatpush1.bf16.msra.mxu0 0
      %1653 = vmatprep.subr.bf16.mxu0 0
      %1654 = vmatpush1.bf16.msra.mxu0 0
      %1655 = vmatprep.subr.bf16.mxu0 0
      %1656 = vmatpush1.bf16.msra.mxu0 0
      %1657 = vmatprep.subr.bf16.mxu0 0
      %1658 = vmatpush1.bf16.msra.mxu0 0
      %1659 = vmatprep.subr.bf16.mxu0 0
      %1660 = vmatpush1.bf16.msra.mxu0 0
      %1661 = vmatprep.subr.bf16.mxu0 0
      %1662 = vmatpush1.bf16.msra.mxu0 0
      %1663 = vmatprep.mubr.bf16.mxu0 0
      %1664 = vmatmul.mubr.bf16.gmra.mrb[0].mxu0 %v1185
      %v1665 = vpop.f32.mrb[0].mxu0
      %v1666 = vadd.f32 %v1605, %v1665
      %v1667 = vpop.f32.mrb[0].mxu0
      %v1668 = vpop.f32.mrb[0].mxu0
      %v1669 = vadd.f32 %v1605, %v1668
      %v1670 = vpop.f32.mrb[0].mxu0
      %1671 = vmatprep.mubr.bf16.mxu0 0
      %1672 = vmatmul.mubr.bf16.gmra.mrb[0].mxu0 %v1188
      %v1673 = vpop.f32.mrb[0].mxu0
      %v1674 = vadd.f32 %v1605, %v1673
      %v1675 = vpop.f32.mrb[0].mxu0
      %v1676 = vpop.f32.mrb[0].mxu0
      %v1677 = vadd.f32 %v1605, %v1676
      %v1678 = vpop.f32.mrb[0].mxu0
      %1679 = vmatprep.mubr.bf16.mxu0 0
      %1680 = vmatmul.mubr.bf16.gmra.mrb[0].mxu0 %v1191
      %v1681 = vpop.f32.mrb[0].mxu0
      %v1682 = vadd.f32 %v1605, %v1681
      %v1683 = vpop.f32.mrb[0].mxu0
      %v1684 = vpop.f32.mrb[0].mxu0
      %v1685 = vadd.f32 %v1605, %v1684
      %v1686 = vpop.f32.mrb[0].mxu0
      %1687 = vmatprep.mubr.bf16.mxu0 0
      %1688 = vmatmul.mubr.bf16.gmra.mrb[0].mxu0 %v1194
      %v1689 = vpop.f32.mrb[0].mxu0
      %v1690 = vadd.f32 %v1605, %v1689
      %v1691 = vpop.f32.mrb[0].mxu0
      %v1692 = vpop.f32.mrb[0].mxu0
      %v1693 = vadd.f32 %v1605, %v1692
      %v1694 = vpop.f32.mrb[0].mxu0
      %1695 = vdwg.mxu0
      %v1696 = vpack.c.bf16 %v1669, %v1666
      %v1697 = vpack.c.bf16 %v1677, %v1674
      %v1698 = vpack.c.bf16 %v1685, %v1682
      %v1699 = vpack.c.bf16 %v1693, %v1690
      %v1704 = vunpack.c.l.b16 %v1696
      %v1705 = vunpack.c.h.b16 %v1696
      %v1706 = vunpack.c.l.b16 %v1697
      %v1707 = vunpack.c.h.b16 %v1697
      %v1708 = vunpack.c.l.b16 %v1698
      %v1709 = vunpack.c.h.b16 %v1698
      %v1710 = vunpack.c.l.b16 %v1699
      %v1711 = vunpack.c.h.b16 %v1699
      %v1712 = vpack.c.b16 %v1704, %v1704
      %v1713 = vpack.c.b16 %v1705, %v1705
      %v1714 = vpack.c.b16 %v1706, %v1706
      %v1715 = vpack.c.b16 %v1707, %v1707
      %v1716 = vpack.c.b16 %v1708, %v1708
      %v1717 = vpack.c.b16 %v1709, %v1709
      %v1718 = vpack.c.b16 %v1710, %v1710
      %v1719 = vpack.c.b16 %v1711, %v1711
      %s1728 = scalar_lea.vmem %s455, 32
      %1729 = vst.msk [vmem:[%s1728] sm:$0xf] %vm1293, %v1712
      %1730 = vst.msk [vmem:[%s1728 + $0x4] sm:$0xf] %vm1293, %v1713
      %1731 = vst.msk [vmem:[%s1728 + $0x8] sm:$0xf] %vm1293, %v1714
      %1732 = vst.msk [vmem:[%s1728 + $0xc] sm:$0xf] %vm1293, %v1715
      %1733 = vst.msk [vmem:[%s1728 + $0x10] sm:$0xf] %vm1293, %v1716
      %1734 = vst.msk [vmem:[%s1728 + $0x14] sm:$0xf] %vm1293, %v1717
      %1735 = vst.msk [vmem:[%s1728 + $0x18] sm:$0xf] %vm1293, %v1718
      %1736 = vst.msk [vmem:[%s1728 + $0x1c] sm:$0xf] %vm1293, %v1719
      %s1737 = scalar_lea.vmem %s7, 32
      %v1738 = vld [vmem:[%s1737] sm:$0xf]
      %v1739 = vld [vmem:[%s1737 + $0x4] sm:$0xf]
      %v1740 = vld [vmem:[%s1737 + $0x8] sm:$0xf]
      %v1741 = vld [vmem:[%s1737 + $0xc] sm:$0xf]
      %v1742 = vld [vmem:[%s1737 + $0x10] sm:$0xf]
      %v1743 = vld [vmem:[%s1737 + $0x14] sm:$0xf]
      %v1744 = vld [vmem:[%s1737 + $0x18] sm:$0xf]
      %v1745 = vld [vmem:[%s1737 + $0x1c] sm:$0xf]
      %s1746 = scalar_lea.vmem %s8, 1
      %v1747 = vld [vmem:[%s1746] sm:$0x1]
      %v1749 = vlaneseq
      %v1750 = vshrl.u32 %v1749, 7
      %v1751 = vsub.s32 0, %v1750
      %v1752 = vrot.slane %v1747, %v1751
      %v1762 = vunpack.c.l.b16 %v1738
      %v1763 = vunpack.c.l.b16 %v1739
      %v1764 = vunpack.c.l.b16 %v1740
      %v1765 = vunpack.c.l.b16 %v1741
      %v1766 = vunpack.c.l.b16 %v1742
      %v1767 = vunpack.c.l.b16 %v1743
      %v1768 = vunpack.c.l.b16 %v1744
      %v1769 = vunpack.c.l.b16 %v1745
      %v1770 = vpack.c.b16 %v1763, %v1762
      %v1771 = vpack.c.b16 %v1765, %v1764
      %v1772 = vpack.c.b16 %v1767, %v1766
      %v1773 = vpack.c.b16 %v1769, %v1768
      %1778 = vmatprep.subr.bf16.mxu0 0
      %1779 = vmatpush1.bf16.msra.mxu0 %v1770
      %1780 = vmatprep.subr.bf16.mxu0 0
      %1781 = vmatpush1.bf16.msra.mxu0 %v1771
      %1782 = vmatprep.subr.bf16.mxu0 0
      %1783 = vmatpush1.bf16.msra.mxu0 %v1772
      %1784 = vmatprep.subr.bf16.mxu0 0
      %1785 = vmatpush1.bf16.msra.mxu0 %v1773
      %1786 = vmatprep.subr.bf16.mxu0 0
      %1787 = vmatpush1.bf16.msra.mxu0 0
      %1788 = vmatprep.subr.bf16.mxu0 0
      %1789 = vmatpush1.bf16.msra.mxu0 0
      %1790 = vmatprep.subr.bf16.mxu0 0
      %1791 = vmatpush1.bf16.msra.mxu0 0
      %1792 = vmatprep.subr.bf16.mxu0 0
      %1793 = vmatpush1.bf16.msra.mxu0 0
      %1794 = vmatprep.subr.bf16.mxu0 0
      %1795 = vmatpush1.bf16.msra.mxu0 0
      %1796 = vmatprep.subr.bf16.mxu0 0
      %1797 = vmatpush1.bf16.msra.mxu0 0
      %1798 = vmatprep.subr.bf16.mxu0 0
      %1799 = vmatpush1.bf16.msra.mxu0 0
      %1800 = vmatprep.subr.bf16.mxu0 0
      %1801 = vmatpush1.bf16.msra.mxu0 0
      %1802 = vmatprep.subr.bf16.mxu0 0
      %1803 = vmatpush1.bf16.msra.mxu0 0
      %1804 = vmatprep.subr.bf16.mxu0 0
      %1805 = vmatpush1.bf16.msra.mxu0 0
      %1806 = vmatprep.subr.bf16.mxu0 0
      %1807 = vmatpush1.bf16.msra.mxu0 0
      %1808 = vmatprep.subr.bf16.mxu0 0
      %1809 = vmatpush1.bf16.msra.mxu0 0
      %1810 = vmatprep.mubr.bf16.mxu0 0
      %1811 = vmatmul.mubr.bf16.gmra.mrb[0].mxu0 %v1185
      %v1812 = vpop.f32.mrb[0].mxu0
      %v1813 = vadd.f32 %v1752, %v1812
      %v1814 = vpop.f32.mrb[0].mxu0
      %v1815 = vpop.f32.mrb[0].mxu0
      %v1816 = vadd.f32 %v1752, %v1815
      %v1817 = vpop.f32.mrb[0].mxu0
      %1818 = vmatprep.mubr.bf16.mxu0 0
      %1819 = vmatmul.mubr.bf16.gmra.mrb[0].mxu0 %v1188
      %v1820 = vpop.f32.mrb[0].mxu0
      %v1821 = vadd.f32 %v1752, %v1820
      %v1822 = vpop.f32.mrb[0].mxu0
      %v1823 = vpop.f32.mrb[0].mxu0
      %v1824 = vadd.f32 %v1752, %v1823
      %v1825 = vpop.f32.mrb[0].mxu0
      %1826 = vmatprep.mubr.bf16.mxu0 0
      %1827 = vmatmul.mubr.bf16.gmra.mrb[0].mxu0 %v1191
      %v1828 = vpop.f32.mrb[0].mxu0
      %v1829 = vadd.f32 %v1752, %v1828
      %v1830 = vpop.f32.mrb[0].mxu0
      %v1831 = vpop.f32.mrb[0].mxu0
      %v1832 = vadd.f32 %v1752, %v1831
      %v1833 = vpop.f32.mrb[0].mxu0
      %1834 = vmatprep.mubr.bf16.mxu0 0
      %1835 = vmatmul.mubr.bf16.gmra.mrb[0].mxu0 %v1194
      %v1836 = vpop.f32.mrb[0].mxu0
      %v1837 = vadd.f32 %v1752, %v1836
      %v1838 = vpop.f32.mrb[0].mxu0
      %v1839 = vpop.f32.mrb[0].mxu0
      %v1840 = vadd.f32 %v1752, %v1839
      %v1841 = vpop.f32.mrb[0].mxu0
      %1842 = vdwg.mxu0
      %v1843 = vpack.c.bf16 %v1816, %v1813
      %v1844 = vpack.c.bf16 %v1824, %v1821
      %v1845 = vpack.c.bf16 %v1832, %v1829
      %v1846 = vpack.c.bf16 %v1840, %v1837
      %v1851 = vunpack.c.l.b16 %v1843
      %v1852 = vunpack.c.h.b16 %v1843
      %v1853 = vunpack.c.l.b16 %v1844
      %v1854 = vunpack.c.h.b16 %v1844
      %v1855 = vunpack.c.l.b16 %v1845
      %v1856 = vunpack.c.h.b16 %v1845
      %v1857 = vunpack.c.l.b16 %v1846
      %v1858 = vunpack.c.h.b16 %v1846
      %v1859 = vpack.c.b16 %v1851, %v1851
      %v1860 = vpack.c.b16 %v1852, %v1852
      %v1861 = vpack.c.b16 %v1853, %v1853
      %v1862 = vpack.c.b16 %v1854, %v1854
      %v1863 = vpack.c.b16 %v1855, %v1855
      %v1864 = vpack.c.b16 %v1856, %v1856
      %v1865 = vpack.c.b16 %v1857, %v1857
      %v1866 = vpack.c.b16 %v1858, %v1858
      %s1875 = scalar_lea.vmem %s460, 32
      %1876 = vst.msk [vmem:[%s1875] sm:$0xf] %vm1293, %v1859
      %1877 = vst.msk [vmem:[%s1875 + $0x4] sm:$0xf] %vm1293, %v1860
      %1878 = vst.msk [vmem:[%s1875 + $0x8] sm:$0xf] %vm1293, %v1861
      %1879 = vst.msk [vmem:[%s1875 + $0xc] sm:$0xf] %vm1293, %v1862
      %1880 = vst.msk [vmem:[%s1875 + $0x10] sm:$0xf] %vm1293, %v1863
      %1881 = vst.msk [vmem:[%s1875 + $0x14] sm:$0xf] %vm1293, %v1864
      %1882 = vst.msk [vmem:[%s1875 + $0x18] sm:$0xf] %vm1293, %v1865
      %1883 = vst.msk [vmem:[%s1875 + $0x1c] sm:$0xf] %vm1293, %v1866
      %s1884 = scalar_lea.vmem %s9, 32
      %v1885 = vld [vmem:[%s1884] sm:$0xf]
      %v1886 = vld [vmem:[%s1884 + $0x4] sm:$0xf]
      %v1887 = vld [vmem:[%s1884 + $0x8] sm:$0xf]
      %v1888 = vld [vmem:[%s1884 + $0xc] sm:$0xf]
      %v1889 = vld [vmem:[%s1884 + $0x10] sm:$0xf]
      %v1890 = vld [vmem:[%s1884 + $0x14] sm:$0xf]
      %v1891 = vld [vmem:[%s1884 + $0x18] sm:$0xf]
      %v1892 = vld [vmem:[%s1884 + $0x1c] sm:$0xf]
      %s1893 = scalar_lea.vmem %s10, 1
      %v1894 = vld [vmem:[%s1893] sm:$0x1]
      %v1896 = vlaneseq
      %v1897 = vshrl.u32 %v1896, 7
      %v1898 = vsub.s32 0, %v1897
      %v1899 = vrot.slane %v1894, %v1898
      %v1909 = vunpack.c.l.b16 %v1885
      %v1910 = vunpack.c.l.b16 %v1886
      %v1911 = vunpack.c.l.b16 %v1887
      %v1912 = vunpack.c.l.b16 %v1888
      %v1913 = vunpack.c.l.b16 %v1889
      %v1914 = vunpack.c.l.b16 %v1890
      %v1915 = vunpack.c.l.b16 %v1891
      %v1916 = vunpack.c.l.b16 %v1892
      %v1917 = vpack.c.b16 %v1910, %v1909
      %v1918 = vpack.c.b16 %v1912, %v1911
      %v1919 = vpack.c.b16 %v1914, %v1913
      %v1920 = vpack.c.b16 %v1916, %v1915
      %1925 = vmatprep.subr.bf16.mxu0 0
      %1926 = vmatpush1.bf16.msra.mxu0 %v1917
      %1927 = vmatprep.subr.bf16.mxu0 0
      %1928 = vmatpush1.bf16.msra.mxu0 %v1918
      %1929 = vmatprep.subr.bf16.mxu0 0
      %1930 = vmatpush1.bf16.msra.mxu0 %v1919
      %1931 = vmatprep.subr.bf16.mxu0 0
      %1932 = vmatpush1.bf16.msra.mxu0 %v1920
      %1933 = vmatprep.subr.bf16.mxu0 0
      %1934 = vmatpush1.bf16.msra.mxu0 0
      %1935 = vmatprep.subr.bf16.mxu0 0
      %1936 = vmatpush1.bf16.msra.mxu0 0
      %1937 = vmatprep.subr.bf16.mxu0 0
      %1938 = vmatpush1.bf16.msra.mxu0 0
      %1939 = vmatprep.subr.bf16.mxu0 0
      %1940 = vmatpush1.bf16.msra.mxu0 0
      %1941 = vmatprep.subr.bf16.mxu0 0
      %1942 = vmatpush1.bf16.msra.mxu0 0
      %1943 = vmatprep.subr.bf16.mxu0 0
      %1944 = vmatpush1.bf16.msra.mxu0 0
      %1945 = vmatprep.subr.bf16.mxu0 0
      %1946 = vmatpush1.bf16.msra.mxu0 0
      %1947 = vmatprep.subr.bf16.mxu0 0
      %1948 = vmatpush1.bf16.msra.mxu0 0
      %1949 = vmatprep.subr.bf16.mxu0 0
      %1950 = vmatpush1.bf16.msra.mxu0 0
      %1951 = vmatprep.subr.bf16.mxu0 0
      %1952 = vmatpush1.bf16.msra.mxu0 0
      %1953 = vmatprep.subr.bf16.mxu0 0
      %1954 = vmatpush1.bf16.msra.mxu0 0
      %1955 = vmatprep.subr.bf16.mxu0 0
      %1956 = vmatpush1.bf16.msra.mxu0 0
      %1957 = vmatprep.mubr.bf16.mxu0 0
      %1958 = vmatmul.mubr.bf16.gmra.mrb[0].mxu0 %v1185
      %v1959 = vpop.f32.mrb[0].mxu0
      %v1960 = vadd.f32 %v1899, %v1959
      %v1961 = vpop.f32.mrb[0].mxu0
      %v1962 = vpop.f32.mrb[0].mxu0
      %v1963 = vadd.f32 %v1899, %v1962
      %v1964 = vpop.f32.mrb[0].mxu0
      %1965 = vmatprep.mubr.bf16.mxu0 0
      %1966 = vmatmul.mubr.bf16.gmra.mrb[0].mxu0 %v1188
      %v1967 = vpop.f32.mrb[0].mxu0
      %v1968 = vadd.f32 %v1899, %v1967
      %v1969 = vpop.f32.mrb[0].mxu0
      %v1970 = vpop.f32.mrb[0].mxu0
      %v1971 = vadd.f32 %v1899, %v1970
      %v1972 = vpop.f32.mrb[0].mxu0
      %1973 = vmatprep.mubr.bf16.mxu0 0
      %1974 = vmatmul.mubr.bf16.gmra.mrb[0].mxu0 %v1191
      %v1975 = vpop.f32.mrb[0].mxu0
      %v1976 = vadd.f32 %v1899, %v1975
      %v1977 = vpop.f32.mrb[0].mxu0
      %v1978 = vpop.f32.mrb[0].mxu0
      %v1979 = vadd.f32 %v1899, %v1978
      %v1980 = vpop.f32.mrb[0].mxu0
      %1981 = vmatprep.mubr.bf16.mxu0 0
      %1982 = vmatmul.mubr.bf16.gmra.mrb[0].mxu0 %v1194
      %v1983 = vpop.f32.mrb[0].mxu0
      %v1984 = vadd.f32 %v1899, %v1983
      %v1985 = vpop.f32.mrb[0].mxu0
      %v1986 = vpop.f32.mrb[0].mxu0
      %v1987 = vadd.f32 %v1899, %v1986
      %v1988 = vpop.f32.mrb[0].mxu0
      %1989 = vdwg.mxu0
      %v1990 = vpack.c.bf16 %v1963, %v1960
      %v1991 = vpack.c.bf16 %v1971, %v1968
      %v1992 = vpack.c.bf16 %v1979, %v1976
      %v1993 = vpack.c.bf16 %v1987, %v1984
      %v1998 = vunpack.c.l.b16 %v1990
      %v1999 = vunpack.c.h.b16 %v1990
      %v2000 = vunpack.c.l.b16 %v1991
      %v2001 = vunpack.c.h.b16 %v1991
      %v2002 = vunpack.c.l.b16 %v1992
      %v2003 = vunpack.c.h.b16 %v1992
      %v2004 = vunpack.c.l.b16 %v1993
      %v2005 = vunpack.c.h.b16 %v1993
      %v2006 = vpack.c.b16 %v1998, %v1998
      %v2007 = vpack.c.b16 %v1999, %v1999
      %v2008 = vpack.c.b16 %v2000, %v2000
      %v2009 = vpack.c.b16 %v2001, %v2001
      %v2010 = vpack.c.b16 %v2002, %v2002
      %v2011 = vpack.c.b16 %v2003, %v2003
      %v2012 = vpack.c.b16 %v2004, %v2004
      %v2013 = vpack.c.b16 %v2005, %v2005
      %s2022 = scalar_lea.vmem %s465, 32
      %2023 = vst.msk [vmem:[%s2022] sm:$0xf] %vm1293, %v2006
      %2024 = vst.msk [vmem:[%s2022 + $0x4] sm:$0xf] %vm1293, %v2007
      %2025 = vst.msk [vmem:[%s2022 + $0x8] sm:$0xf] %vm1293, %v2008
      %2026 = vst.msk [vmem:[%s2022 + $0xc] sm:$0xf] %vm1293, %v2009
      %2027 = vst.msk [vmem:[%s2022 + $0x10] sm:$0xf] %vm1293, %v2010
      %2028 = vst.msk [vmem:[%s2022 + $0x14] sm:$0xf] %vm1293, %v2011
      %2029 = vst.msk [vmem:[%s2022 + $0x18] sm:$0xf] %vm1293, %v2012
      %2030 = vst.msk [vmem:[%s2022 + $0x1c] sm:$0xf] %vm1293, %v2013
      %p2031 = scmp.lt.s32.totalorder %s25, 1
      %s2032 = scalar_select %p2031, %s25, 1
      %s2033 = smul.addr %s2032, 16
      %s2034 = smul.addr %s2033, 4
      %s2035 = scalar_lea.vmem %s11, %s2034
      %p2036 = scmp.lt.s32.totalorder %s25, 1
      %s2037 = scalar_select %p2036, %s25, 1
      %s2038 = smul.addr %s2037, 16
      %s2039 = smul.addr %s2038, 4
      %s2040 = scalar_lea.vmem %s12, %s2039
      %p2041 = scmp.lt.s32.totalorder %s25, 1
      %s2042 = scalar_select %p2041, %s25, 1
      %s2043 = smul.addr %s2042, 16
      %s2044 = smul.addr %s2043, 4
      %s2045 = scalar_lea.vmem %s13, %s2044
      // Predicated region
      $region65: #{tpu_custom_call.1} parent=63 // pred_check
        %p2046 = pneg %p279
      $region66: #{tpu_custom_call.1} parent=63 // pred_check_branch
        %2048 = sbr.rel (%p2046) target = $region68
      $region67: #{tpu_custom_call.1} parent=63 // pred_region
        _
      $region68: #{tpu_custom_call.1} parent=63 // pred_fallthru
        _
      // Predicated region
      $region69: #{tpu_custom_call.1} parent=63 // pred_check
        %p2049 = pneg %p305
      $region70: #{tpu_custom_call.1} parent=63 // pred_check_branch
        %2051 = sbr.rel (%p2049) target = $region72
      $region71: #{tpu_custom_call.1} parent=63 // pred_region
        _
      $region72: #{tpu_custom_call.1} parent=63 // pred_fallthru
        _
      // Predicated region
      $region73: #{tpu_custom_call.1} parent=63 // pred_check
        %p2052 = pneg %p331
      $region74: #{tpu_custom_call.1} parent=63 // pred_check_branch
        %2054 = sbr.rel (%p2052) target = $region76
      $region75: #{tpu_custom_call.1} parent=63 // pred_region
        _
      $region76: #{tpu_custom_call.1} parent=63 // pred_fallthru
        _
    $region64: #{tpu_custom_call.1} parent=5 // pred_fallthru
      _
    %p2055 = scmp.le.s32.totalorder 2, %s20
    // Predicated region
    $region77: #{tpu_custom_call.1} parent=5 // pred_check
      %p2056 = pneg %p2055
    $region78: #{tpu_custom_call.1} parent=5 // pred_check_branch
      %2058 = sbr.rel (%p2056) target = $region80
    $region79: #{tpu_custom_call.1} parent=5 // pred_region
      %s2059 = ssub.s32 %s20, 2
      // Predicated region
      $region81: #{tpu_custom_call.1} parent=79 // pred_check
        %p2060 = pneg %p285
      $region82: #{tpu_custom_call.1} parent=79 // pred_check_branch
        %2062 = sbr.rel (%p2060) target = $region84
      $region83: #{tpu_custom_call.1} parent=79 // pred_region
        %p2063 = scmp.lt.s32.totalorder %s26, 1
        %s2064 = scalar_select %p2063, %s26, 1
        %s2065 = smul.addr %s2064, 16
        %s2066 = smul.addr %s2065, 4
        %s2067 = scalar_lea.vmem %s11, %s2066
      $region84: #{tpu_custom_call.1} parent=79 // pred_fallthru
        _
      // Predicated region
      $region85: #{tpu_custom_call.1} parent=79 // pred_check
        %p2068 = pneg %p311
      $region86: #{tpu_custom_call.1} parent=79 // pred_check_branch
        %2070 = sbr.rel (%p2068) target = $region88
      $region87: #{tpu_custom_call.1} parent=79 // pred_region
        %p2071 = scmp.lt.s32.totalorder %s26, 1
        %s2072 = scalar_select %p2071, %s26, 1
        %s2073 = smul.addr %s2072, 16
        %s2074 = smul.addr %s2073, 4
        %s2075 = scalar_lea.vmem %s12, %s2074
      $region88: #{tpu_custom_call.1} parent=79 // pred_fallthru
        _
      // Predicated region
      $region89: #{tpu_custom_call.1} parent=79 // pred_check
        %p2076 = pneg %p337
      $region90: #{tpu_custom_call.1} parent=79 // pred_check_branch
        %2078 = sbr.rel (%p2076) target = $region92
      $region91: #{tpu_custom_call.1} parent=79 // pred_region
        %p2079 = scmp.lt.s32.totalorder %s26, 1
        %s2080 = scalar_select %p2079, %s26, 1
        %s2081 = smul.addr %s2080, 16
        %s2082 = smul.addr %s2081, 4
        %s2083 = scalar_lea.vmem %s13, %s2082
      $region92: #{tpu_custom_call.1} parent=79 // pred_fallthru
        _
    $region80: #{tpu_custom_call.1} parent=5 // pred_fallthru
      _
  $region6: #{tpu_custom_call.1} parent=0 // loop_footer
    %s24 = sadd.s32 1, %s20
  $region7: #{tpu_custom_call.1} parent=0 // loop_footer_branch
    %19 = sbr.rel target = $region3
  $region8: #{tpu_custom_call.1} parent=0 // loop_exit
    _

</llo_original>
